<compile_context>
chip_gen: v7x
topology: tpu7x:2x2x1
jax: 0.10.0
libtpu: 0.0.40
codegen_flags: <defaults>
</compile_context>

<pallas_src>
import numpy as np
import jax
import jax.numpy as jnp
from jax.experimental import pallas as pl
from jax.experimental.pallas import tpu as pltpu


# ------------------------- chip detection (wrapper-side) ------------------------- #

def _is_v5_chip():
    """True on the TPU v5 family (128x128 MXU, no bf16 VPU)."""
    try:
        kind = jax.devices()[0].device_kind.lower()
    except Exception:
        return False
    return "v5" in kind


# ------------------------------- Pallas kernels ---------------------------------- #

def _fused_decoder_kernel(x_ref, w1_ref, b1_ref, w2_ref, b2_ref, w3_ref, b3_ref,
                          o_ref):
    """v6e/v7x path: single block-diag matmuls, bf16 bias+ReLU epilogue."""
    # x_ref:  (1, 128, tp)        w1: (256,128) bf16   b1: (256,1) bf16
    # w2: (256,256) bf16 (blockdiag x4)   b2: (256,1) bf16
    # w3: (64,256)  bf16 (blockdiag x16)  b3: (64,1)  f32
    # o_ref: (1, 64, tp) f32, rows = KH*8 + KW
    x = x_ref[0].astype(jnp.bfloat16)                                        # [128, tp]
    h1 = jnp.dot(w1_ref[...], x,
                 preferred_element_type=jnp.float32).astype(jnp.bfloat16)   # [256, tp]
    h1 = jnp.maximum(h1 + b1_ref[...], 0.0)                                  # bf16 VPU
    h2 = jnp.dot(w2_ref[...], h1,
                 preferred_element_type=jnp.float32).astype(jnp.bfloat16)   # [256, tp]
    h2 = jnp.maximum(h2 + b2_ref[...], 0.0)                                  # bf16 VPU
    y = jnp.dot(w3_ref[...], h2, preferred_element_type=jnp.float32)        # [64, tp]
    o_ref[0] = (y + b3_ref[...]).astype(o_ref.dtype)


def _fused_decoder_kernel_split(x_ref, w1_ref, b1_ref, w2q_ref, b2_ref, w3h_ref,
                                b3_ref, o_ref):
    """v5 path: skip the all-zero off-diagonal quadrants; f32 epilogue."""
    # w2q: (128,128) bf16 (top-left == bottom-right quadrant of W2_blk)
    # w3h: (32,128)  bf16 (top-left == bottom-right quadrant of W3_blk)
    x = x_ref[0].astype(jnp.bfloat16)                                        # [128, tp]
    h1 = jnp.dot(w1_ref[...], x, preferred_element_type=jnp.float32)        # [256, tp]
    h1 = jnp.maximum(h1 + b1_ref[...], 0.0).astype(jnp.bfloat16)
    w2q = w2q_ref[...]
    b2 = b2_ref[...]
    h2a = jnp.dot(w2q, h1[:128], preferred_element_type=jnp.float32)        # [128, tp]
    h2b = jnp.dot(w2q, h1[128:], preferred_element_type=jnp.float32)        # [128, tp]
    h2a = jnp.maximum(h2a + b2[:128], 0.0).astype(jnp.bfloat16)
    h2b = jnp.maximum(h2b + b2[128:], 0.0).astype(jnp.bfloat16)
    w3h = w3h_ref[...]
    b3 = b3_ref[...]
    ya = jnp.dot(w3h, h2a, preferred_element_type=jnp.float32)              # [32, tp]
    yb = jnp.dot(w3h, h2b, preferred_element_type=jnp.float32)              # [32, tp]
    o_ref[0, :32, :] = (ya + b3[:32]).astype(o_ref.dtype)
    o_ref[0, 32:, :] = (yb + b3[32:]).astype(o_ref.dtype)


# ----------------------------- parameter repacking -------------------------------- #

def _khkw_row_perm():
    """Permutation taking rows ordered (kh1,kw1,kh2,kw2,kh3,kw3) to (KH, KW) order,
    KH = 4*kh1 + 2*kh2 + kh3, KW = 4*kw1 + 2*kw2 + kw3 (depth-to-space layout)."""
    perm = np.zeros(64, dtype=np.int32)
    for a in range(2):              # kh1
        for b in range(2):          # kw1
            for c in range(2):      # kh2
                for d in range(2):  # kw2
                    for e in range(2):      # kh3
                        for f in range(2):  # kw3
                            old = a * 32 + b * 16 + c * 8 + d * 4 + e * 2 + f
                            new = (4 * a + 2 * c + e) * 8 + (4 * b + 2 * d + f)
                            perm[new] = old
    return perm


_ROW_PERM = _khkw_row_perm()


def _pack_fused_params(params, split_w2):
    """PyTorch-layout ConvTranspose2d params -> fused kernel operands."""
    w1, b1 = params["dec1_w"], params["dec1_b"]   # (128,64,2,2), (64,)
    w2, b2 = params["dec2_w"], params["dec2_b"]   # (64,16,2,2),  (16,)
    w3, b3 = params["out_w"], params["out_b"]     # (16,1,2,2),   (1,)

    # Row ordering (kh, kw, co); columns = input channels.
    w1t = jnp.transpose(w1, (2, 3, 1, 0)).reshape(4 * 64, 128)            # (256,128)
    blk2 = jnp.transpose(w2, (2, 3, 1, 0)).reshape(4 * 16, 64)            # (64,64)
    blk3 = jnp.transpose(w3, (2, 3, 1, 0)).reshape(4 * 1, 16)             # (4,16)
    w2t = jnp.kron(jnp.eye(4, dtype=w2.dtype), blk2)                      # (256,256)
    w3t = jnp.kron(jnp.eye(16, dtype=w3.dtype), blk3)                     # (64,256)

    b1c = jnp.tile(b1, 4)[:, None]                                        # (256,1)
    b2c = jnp.tile(b2, 16)[:, None]                                       # (256,1)
    b3c = jnp.tile(b3, 64)[:, None]                                       # (64,1)

    # Reorder the fused output rows to (KH, KW) depth-to-space order.
    w3t = w3t[_ROW_PERM]
    b3c = b3c[_ROW_PERM].astype(jnp.float32)

    w1t = w1t.astype(jnp.bfloat16)
    if split_w2:
        # v5: dense diagonal quadrants only, f32 biases (f32 VPU epilogue).
        w2q = w2t[:128, :128].astype(jnp.bfloat16)    # == w2t[128:,128:]
        w3h = w3t[:32, :128].astype(jnp.bfloat16)     # == w3t[32:,128:]
        return (w1t, b1c.astype(jnp.float32),
                w2q, b2c.astype(jnp.float32),
                w3h, b3c)
    # v6e/v7x: single block-diag matmuls, bf16 biases (bf16 VPU epilogue).
    return (w1t, b1c.astype(jnp.bfloat16),
            w2t.astype(jnp.bfloat16), b2c.astype(jnp.bfloat16),
            w3t.astype(jnp.bfloat16), b3c)


def _pick_pixel_tile(P):
    # ~12 MiB live at tp=2048 (incl. double buffers + f32 intermediates): safe on
    # v5e/v6e (128 MiB VMEM) and v7x (64 MiB VMEM).
    MAX_TP = 2048
    if P <= MAX_TP:
        return P                      # full axis: legal; lane-dense when P % 128 == 0
    # Prefer a lane-dense tile that divides P (no masked remainder stores).
    for tp in range(MAX_TP, 1024 - 1, -128):
        if P % tp == 0:
            return tp
    return MAX_TP                     # remainder tile is masked (correct, minor perf hit)


# ------------------------------------ forward ------------------------------------- #

def decoder_forward(params, x):
    """x: [N, 128, H, W] (NCHW, f32) -> [N, 1, 8H, 8W] (f32)."""
    N, Cin, H, W = x.shape
    assert Cin == 128, Cin
    P = H * W
    tp = _pick_pixel_tile(P)

    split = _is_v5_chip()
    kernel = _fused_decoder_kernel_split if split else _fused_decoder_kernel
    w_ops = _pack_fused_params(params, split_w2=split)

    x_cols = x.reshape(N, Cin, P)     # contiguous view; no transpose / extra HBM pass

    out_cols = pl.pallas_call(
        kernel,
        out_shape=jax.ShapeDtypeStruct((N, 64, P), jnp.float32),
        grid_spec=pltpu.PrefetchScalarGridSpec(
            num_scalar_prefetch=0,
            grid=(N, pl.cdiv(P, tp)),
            in_specs=[pl.BlockSpec((1, Cin, tp), lambda n, j: (n, 0, j))]
                     + [pl.BlockSpec(w.shape, lambda n, j: (0, 0)) for w in w_ops],
            out_specs=pl.BlockSpec((1, 64, tp), lambda n, j: (n, 0, j)),
        ),
        compiler_params=pltpu.CompilerParams(
            dimension_semantics=("parallel", "parallel"),
            vmem_limit_bytes=48 * 1024 * 1024,
        ),
    )(x_cols, *w_ops)

    # Depth-to-space: out_cols is [N, KH(8), KW(8), H, W];
    # output pixel (8h + KH, 8w + KW) = out_cols[n, KH, KW, h, w].
    # TODO(synk): fuse this permute into the kernel (XLU lane interleave) once the
    # Mosaic relayout for it is verified; left to XLA here for guaranteed lowering.
    y = out_cols.reshape(N, 8, 8, H, W)
    y = jnp.transpose(y, (0, 3, 1, 4, 2))             # (N, H, KH, W, KW)
    return y.reshape(N, 1, 8 * H, 8 * W)


# -------------------------- pure-JAX reference (f32) ------------------------------ #

def _conv_transpose_2x2_ref(x, w, b, relu):
    # ConvTranspose2d(Cin, Cout, 2, stride=2, padding=0, bias=True) [+ReLU].
    y = jnp.einsum('nchw,cokl->nohkwl', x, w)
    N, Co, H, _, W, _ = y.shape
    y = y.reshape(N, Co, 2 * H, 2 * W) + b[None, :, None, None]
    return jnp.maximum(y, 0.0) if relu else y


def decoder_reference(params, x):
    h = _conv_transpose_2x2_ref(x, params["dec1_w"], params["dec1_b"], True)
    h = _conv_transpose_2x2_ref(h, params["dec2_w"], params["dec2_b"], True)
    return _conv_transpose_2x2_ref(h, params["out_w"], params["out_b"], False)


# ------------------------------------- params ------------------------------------- #

def init_decoder_params(key):
    """Deterministic synthetic parameters matching the module's shapes."""
    ks = jax.random.split(key, 6)

    def winit(k, shape, fan_in):
        bound = 1.0 / jnp.sqrt(fan_in)
        return jax.random.uniform(k, shape, jnp.float32, -bound, bound)

    return {
        # DecoderBlockSmall(128, 64): ConvTranspose2d(128, 64, 2, stride=2)
        "dec1_w": winit(ks[0], (128, 64, 2, 2), 128 * 4),
        "dec1_b": winit(ks[1], (64,), 128 * 4),
        # DecoderBlockSmall(64, 16): ConvTranspose2d(64, 16, 2, stride=2)
        "dec2_w": winit(ks[2], (64, 16, 2, 2), 64 * 4),
        "dec2_b": winit(ks[3], (16,), 64 * 4),
        # scalar_output_conv: ConvTranspose2d(16, 1, 2, stride=2)
        "out_w": winit(ks[4], (16, 1, 2, 2), 16 * 4),
        "out_b": winit(ks[5], (1,), 16 * 4),
    }


# -------------------------------------- main --------------------------------------- #

if __name__ == "__main__":
    key = jax.random.PRNGKey(0)
    k_x, k_p = jax.random.split(key)

    # Small but consistent with the module: 128 input channels, 16x16 spatial.
    x = jax.random.normal(k_x, (2, 128, 16, 16), dtype=jnp.float32)
    params = init_decoder_params(k_p)

    out = jax.block_until_ready(jax.jit(decoder_forward)(params, x))
    assert out.shape == (2, 1, 128, 128), out.shape
    assert out.dtype == jnp.float32

    ref = jax.block_until_ready(jax.jit(decoder_reference)(params, x))
    rel_err = jnp.sqrt(jnp.sum((out - ref) ** 2)) / jnp.sqrt(jnp.sum(ref ** 2))
    # bf16 MXU operands / bf16 epilogue with f32 accumulation: ~1e-2 relative error.
    assert float(rel_err) < 5e-2, float(rel_err)

    print("KERNEL_OK")
</pallas_src>

<mosaic_0001>
module attributes {stable_mosaic.version = 11 : i64} {
  func.func @_fused_decoder_kernel(%arg0: i32, %arg1: i32, %arg2: memref<1x128x256xf32, #tpu.memory_space<vmem>>, %arg3: memref<256x128xbf16, #tpu.memory_space<vmem>>, %arg4: memref<256x1xbf16, #tpu.memory_space<vmem>>, %arg5: memref<256x256xbf16, #tpu.memory_space<vmem>>, %arg6: memref<256x1xbf16, #tpu.memory_space<vmem>>, %arg7: memref<64x256xbf16, #tpu.memory_space<vmem>>, %arg8: memref<64x1xf32, #tpu.memory_space<vmem>>, %arg9: memref<1x64x256xf32, #tpu.memory_space<vmem>>) attributes {dimension_semantics = [#tpu.dimension_semantics<parallel>, #tpu.dimension_semantics<parallel>], iteration_bounds = array<i64: 2, 1>, scalar_prefetch = 0 : i64, scratch_operands = 0 : i64, tpu.core_type = #tpu.core_type<tc>, window_params = [{transform_indices = @transform_0, window_bounds = array<i64: 1, 128, 256>}, {pipeline_mode = #tpu.pipeline_mode<synchronous>, transform_indices = @transform_1, window_bounds = array<i64: 256, 128>}, {pipeline_mode = #tpu.pipeline_mode<synchronous>, transform_indices = @transform_2, window_bounds = array<i64: 256, 1>}, {pipeline_mode = #tpu.pipeline_mode<synchronous>, transform_indices = @transform_3, window_bounds = array<i64: 256, 256>}, {pipeline_mode = #tpu.pipeline_mode<synchronous>, transform_indices = @transform_4, window_bounds = array<i64: 256, 1>}, {pipeline_mode = #tpu.pipeline_mode<synchronous>, transform_indices = @transform_5, window_bounds = array<i64: 64, 256>}, {pipeline_mode = #tpu.pipeline_mode<synchronous>, transform_indices = @transform_6, window_bounds = array<i64: 64, 1>}, {transform_indices = @transform_7, window_bounds = array<i64: 1, 64, 256>}]} {
    %c0 = arith.constant 0 : index
    %c0_0 = arith.constant 0 : index
    %c0_1 = arith.constant 0 : index
    %0 = vector.load %arg2[%c0, %c0_0, %c0_1] : memref<1x128x256xf32, #tpu.memory_space<vmem>>, vector<1x128x256xf32>
    %1 = vector.shape_cast %0 : vector<1x128x256xf32> to vector<128x256xf32>
    %2 = arith.truncf %1 : vector<128x256xf32> to vector<128x256xbf16>
    %c0_2 = arith.constant 0 : index
    %c0_3 = arith.constant 0 : index
    %3 = vector.load %arg3[%c0_2, %c0_3] : memref<256x128xbf16, #tpu.memory_space<vmem>>, vector<256x128xbf16>
    %cst = arith.constant dense<0.000000e+00> : vector<256x256xf32>
    %4 = tpu.matmul %3, %2, %cst {dimension_numbers = #tpu.dot_dimension_numbers<[1], [0], [0], [1], [0, 0, 1, 1], [], []>} : vector<256x128xbf16>, vector<128x256xbf16>, vector<256x256xf32> -> vector<256x256xf32>
    %5 = arith.truncf %4 : vector<256x256xf32> to vector<256x256xbf16>
    %c0_4 = arith.constant 0 : index
    %c0_5 = arith.constant 0 : index
    %6 = vector.load %arg4[%c0_4, %c0_5] : memref<256x1xbf16, #tpu.memory_space<vmem>>, vector<256x1xbf16>
    %7 = vector.broadcast %6 : vector<256x1xbf16> to vector<256x256xbf16>
    %8 = arith.addf %5, %7 : vector<256x256xbf16>
    %cst_6 = arith.constant 0.000000e+00 : bf16
    %9 = vector.broadcast %cst_6 : bf16 to vector<256x256xbf16>
    %10 = arith.maximumf %8, %9 : vector<256x256xbf16>
    %c0_7 = arith.constant 0 : index
    %c0_8 = arith.constant 0 : index
    %11 = vector.load %arg5[%c0_7, %c0_8] : memref<256x256xbf16, #tpu.memory_space<vmem>>, vector<256x256xbf16>
    %cst_9 = arith.constant dense<0.000000e+00> : vector<256x256xf32>
    %12 = tpu.matmul %11, %10, %cst_9 {dimension_numbers = #tpu.dot_dimension_numbers<[1], [0], [0], [1], [0, 0, 1, 1], [], []>} : vector<256x256xbf16>, vector<256x256xbf16>, vector<256x256xf32> -> vector<256x256xf32>
    %13 = arith.truncf %12 : vector<256x256xf32> to vector<256x256xbf16>
    %c0_10 = arith.constant 0 : index
    %c0_11 = arith.constant 0 : index
    %14 = vector.load %arg6[%c0_10, %c0_11] : memref<256x1xbf16, #tpu.memory_space<vmem>>, vector<256x1xbf16>
    %15 = vector.broadcast %14 : vector<256x1xbf16> to vector<256x256xbf16>
    %16 = arith.addf %13, %15 : vector<256x256xbf16>
    %cst_12 = arith.constant 0.000000e+00 : bf16
    %17 = vector.broadcast %cst_12 : bf16 to vector<256x256xbf16>
    %18 = arith.maximumf %16, %17 : vector<256x256xbf16>
    %c0_13 = arith.constant 0 : index
    %c0_14 = arith.constant 0 : index
    %19 = vector.load %arg7[%c0_13, %c0_14] : memref<64x256xbf16, #tpu.memory_space<vmem>>, vector<64x256xbf16>
    %cst_15 = arith.constant dense<0.000000e+00> : vector<64x256xf32>
    %20 = tpu.matmul %19, %18, %cst_15 {dimension_numbers = #tpu.dot_dimension_numbers<[1], [0], [0], [1], [0, 0, 1, 1], [], []>} : vector<64x256xbf16>, vector<256x256xbf16>, vector<64x256xf32> -> vector<64x256xf32>
    %c0_16 = arith.constant 0 : index
    %c0_17 = arith.constant 0 : index
    %21 = vector.load %arg8[%c0_16, %c0_17] : memref<64x1xf32, #tpu.memory_space<vmem>>, vector<64x1xf32>
    %22 = vector.broadcast %21 : vector<64x1xf32> to vector<64x256xf32>
    %23 = arith.addf %20, %22 : vector<64x256xf32>
    %c0_18 = arith.constant 0 : index
    %c0_19 = arith.constant 0 : index
    %c0_20 = arith.constant 0 : index
    %24 = vector.load %arg9[%c0_18, %c0_19, %c0_20] : memref<1x64x256xf32, #tpu.memory_space<vmem>>, vector<1x64x256xf32>
    %25 = vector.shape_cast %24 : vector<1x64x256xf32> to vector<64x256xf32>
    %26 = vector.shape_cast %23 : vector<64x256xf32> to vector<1x64x256xf32>
    tpu.vector_store %arg9[%c0_18, %c0_19, %c0_20], %26 {strides = array<i32>} : memref<1x64x256xf32, #tpu.memory_space<vmem>>, vector<1x64x256xf32>,
    return
  }
  func.func @transform_0(%arg0: i32, %arg1: i32) -> (i32, i32, i32) {
    %c0_i32 = arith.constant 0 : i32
    %c0_i32_0 = arith.constant 0 : i32
    return %arg0, %c0_i32, %arg1 : i32, i32, i32
  }
  func.func @transform_1(%arg0: i32, %arg1: i32) -> (i32, i32) {
    %c0_i32 = arith.constant 0 : i32
    %c0_i32_0 = arith.constant 0 : i32
    %c0_i32_1 = arith.constant 0 : i32
    return %c0_i32, %c0_i32_0 : i32, i32
  }
  func.func @transform_2(%arg0: i32, %arg1: i32) -> (i32, i32) {
    %c0_i32 = arith.constant 0 : i32
    %c0_i32_0 = arith.constant 0 : i32
    %c0_i32_1 = arith.constant 0 : i32
    return %c0_i32, %c0_i32_0 : i32, i32
  }
  func.func @transform_3(%arg0: i32, %arg1: i32) -> (i32, i32) {
    %c0_i32 = arith.constant 0 : i32
    %c0_i32_0 = arith.constant 0 : i32
    %c0_i32_1 = arith.constant 0 : i32
    return %c0_i32, %c0_i32_0 : i32, i32
  }
  func.func @transform_4(%arg0: i32, %arg1: i32) -> (i32, i32) {
    %c0_i32 = arith.constant 0 : i32
    %c0_i32_0 = arith.constant 0 : i32
    %c0_i32_1 = arith.constant 0 : i32
    return %c0_i32, %c0_i32_0 : i32, i32
  }
  func.func @transform_5(%arg0: i32, %arg1: i32) -> (i32, i32) {
    %c0_i32 = arith.constant 0 : i32
    %c0_i32_0 = arith.constant 0 : i32
    %c0_i32_1 = arith.constant 0 : i32
    return %c0_i32, %c0_i32_0 : i32, i32
  }
  func.func @transform_6(%arg0: i32, %arg1: i32) -> (i32, i32) {
    %c0_i32 = arith.constant 0 : i32
    %c0_i32_0 = arith.constant 0 : i32
    %c0_i32_1 = arith.constant 0 : i32
    return %c0_i32, %c0_i32_0 : i32, i32
  }
  func.func @transform_7(%arg0: i32, %arg1: i32) -> (i32, i32, i32) {
    %c0_i32 = arith.constant 0 : i32
    %c0_i32_0 = arith.constant 0 : i32
    return %arg0, %c0_i32, %arg1 : i32, i32, i32
  }
}

</mosaic_0001>

<llo_original>
// kernel: decoder_forward.1
$region0: #{decoder_forward.1}
  #allocation0 [shape = 'u32[]', space=smem, size = 0x4, offset = 0x4, fixed_abs, tag = 'smem constant byte address 0x4 - core index']
  #allocation1 [shape = 'u32[144,128]{1,0:T(1,128)}', space=vmem, size = 0x12000, scoped, tag = 'internal scratch']
  %s0 = inlined_call_operand.vmem [shape: f32[2,128,256], index: 0, kind: input, shape index: {}]
  %s1 = inlined_call_operand.vmem [shape: bf16[256,128], index: 1, kind: input, shape index: {}]
  %s2 = inlined_call_operand.vmem [shape: bf16[256,1], index: 2, kind: input, shape index: {}]
  %s3 = inlined_call_operand.vmem [shape: bf16[256,256], index: 3, kind: input, shape index: {}]
  %s4 = inlined_call_operand.vmem [shape: bf16[256,1], index: 4, kind: input, shape index: {}]
  %s5 = inlined_call_operand.vmem [shape: bf16[64,256], index: 5, kind: input, shape index: {}]
  %s6 = inlined_call_operand.vmem [shape: f32[64,1], index: 6, kind: input, shape index: {}]
  %s7 = inlined_call_operand.vmem [shape: f32[2,64,256], index: 7, kind: output, shape index: {}]
  %s8 = sld [smem:[#allocation0]]
  $region61: #{decoder_forward.1} parent=0
    _
  %s10 = ssub.s32 1, %s8
  %s11 = scalar_select 0, %s10, %s8
  loop: start=0, step=1, limit=4
  $region2: #{decoder_forward.1} parent=0 // loop_pre_header
    _
  $region3: #{decoder_forward.1} parent=0 // loop_header
    %s13 = sphi 0, %s17
    %p14 = scmp.ge.s32.totalorder %s13, 4
    %s20 = sphi 0, %s32
    %s21 = sphi 0, %s28
    %s22 = sphi 0, %s20
    %s23 = sphi 0, %s21
    %s24 = sphi 0, %s22
    %s25 = sphi 0, %s23
    %s37 = sphi 0, %s39
    %s40 = sphi 0, %s37
    %s41 = sphi 0, %s40
    %s57 = sphi 0, %s41
    %s61 = sphi 0, %s61
    %s63 = sphi 0, %s61
    %s64 = sphi 0, %s63
    %s78 = sphi 0, %s64
    %s82 = sphi 0, %s82
    %s84 = sphi 0, %s82
    %s85 = sphi 0, %s84
    %s99 = sphi 0, %s85
    %s103 = sphi 0, %s103
    %s105 = sphi 0, %s103
    %s106 = sphi 0, %s105
    %s120 = sphi 0, %s106
    %s124 = sphi 0, %s124
    %s126 = sphi 0, %s124
    %s127 = sphi 0, %s126
    %s141 = sphi 0, %s127
    %s145 = sphi 0, %s145
    %s147 = sphi 0, %s145
    %s148 = sphi 0, %s147
    %s162 = sphi 0, %s148
    %s166 = sphi 0, %s166
    %s168 = sphi 0, %s166
    %s169 = sphi 0, %s168
    %s183 = sphi 0, %s169
    %s191 = sphi 0, %s193
    %s194 = sphi 0, %s191
    %s195 = sphi 0, %s194
    %s211 = sphi 0, %s195
  $region4: #{decoder_forward.1} parent=0 // loop_header_branch
    %16 = sbr.rel (%p14) target = $region8
  $region5: #{decoder_forward.1} parent=0 // loop_body
    %s18 = ssub.s32 %s13, 1
    %s19 = ssub.s32 %s13, 2
    %s26 = sadd.s32 1, %s21
    %p27 = scmp.ge.s32.totalorder %s26, 1
    %s28 = scalar_select %p27, 0, %s26
    %s29 = sadd.s32 1, %s20
    %s30 = scalar_select %p27, %s29, %s20
    %p31 = scmp.ge.s32.totalorder %s30, 2
    %s32 = scalar_select %p31, 0, %s30
    %s33 = ssub.s32 %s20, %s32
    %s34 = ssub.s32 %s21, %s28
    %s35 = sor.u32 %s33, %s34
    %p36 = scmp.eq.s32.totalorder %s35, 0
    %s38 = sadd.s32 %s37, 1
    %s39 = scalar_select %p36, %s37, %s38
    %p42 = pneg %p36
    %p43 = scmp.eq.s32.totalorder %s13, 1
    %p44 = por %p42, %p43
    %p45 = scmp.ne.s32.totalorder %s37, %s40
    %p46 = scmp.eq.s32.totalorder %s13, 0
    %p47 = por %p45, %p46
    %p48 = scmp.ne.s32.totalorder %s37, %s40
    %p49 = scmp.eq.s32.totalorder %s18, 1
    %p50 = por %p48, %p49
    %p51 = scmp.ne.s32.totalorder %s40, %s41
    %p52 = scmp.eq.s32.totalorder %s18, 0
    %p53 = por %p51, %p52
    %p54 = scmp.ne.s32.totalorder %s40, %s41
    %p55 = scmp.eq.s32.totalorder %s19, 1
    %p56 = por %p54, %p55
    %p58 = scmp.ne.s32.totalorder %s41, %s57
    %p59 = scmp.eq.s32.totalorder %s19, 0
    %p60 = por %p58, %p59
    %s62 = sadd.s32 %s61, 1
    %p65 = scmp.eq.s32.totalorder %s13, 1
    %p66 = scmp.ne.s32.totalorder %s61, %s63
    %p67 = scmp.eq.s32.totalorder %s13, 0
    %p68 = por %p66, %p67
    %p69 = scmp.ne.s32.totalorder %s61, %s63
    %p70 = scmp.eq.s32.totalorder %s18, 1
    %p71 = por %p69, %p70
    %p72 = scmp.ne.s32.totalorder %s63, %s64
    %p73 = scmp.eq.s32.totalorder %s18, 0
    %p74 = por %p72, %p73
    %p75 = scmp.ne.s32.totalorder %s63, %s64
    %p76 = scmp.eq.s32.totalorder %s19, 1
    %p77 = por %p75, %p76
    %p79 = scmp.ne.s32.totalorder %s64, %s78
    %p80 = scmp.eq.s32.totalorder %s19, 0
    %p81 = por %p79, %p80
    %s83 = sadd.s32 %s82, 1
    %p86 = scmp.eq.s32.totalorder %s13, 1
    %p87 = scmp.ne.s32.totalorder %s82, %s84
    %p88 = scmp.eq.s32.totalorder %s13, 0
    %p89 = por %p87, %p88
    %p90 = scmp.ne.s32.totalorder %s82, %s84
    %p91 = scmp.eq.s32.totalorder %s18, 1
    %p92 = por %p90, %p91
    %p93 = scmp.ne.s32.totalorder %s84, %s85
    %p94 = scmp.eq.s32.totalorder %s18, 0
    %p95 = por %p93, %p94
    %p96 = scmp.ne.s32.totalorder %s84, %s85
    %p97 = scmp.eq.s32.totalorder %s19, 1
    %p98 = por %p96, %p97
    %p100 = scmp.ne.s32.totalorder %s85, %s99
    %p101 = scmp.eq.s32.totalorder %s19, 0
    %p102 = por %p100, %p101
    %s104 = sadd.s32 %s103, 1
    %p107 = scmp.eq.s32.totalorder %s13, 1
    %p108 = scmp.ne.s32.totalorder %s103, %s105
    %p109 = scmp.eq.s32.totalorder %s13, 0
    %p110 = por %p108, %p109
    %p111 = scmp.ne.s32.totalorder %s103, %s105
    %p112 = scmp.eq.s32.totalorder %s18, 1
    %p113 = por %p111, %p112
    %p114 = scmp.ne.s32.totalorder %s105, %s106
    %p115 = scmp.eq.s32.totalorder %s18, 0
    %p116 = por %p114, %p115
    %p117 = scmp.ne.s32.totalorder %s105, %s106
    %p118 = scmp.eq.s32.totalorder %s19, 1
    %p119 = por %p117, %p118
    %p121 = scmp.ne.s32.totalorder %s106, %s120
    %p122 = scmp.eq.s32.totalorder %s19, 0
    %p123 = por %p121, %p122
    %s125 = sadd.s32 %s124, 1
    %p128 = scmp.eq.s32.totalorder %s13, 1
    %p129 = scmp.ne.s32.totalorder %s124, %s126
    %p130 = scmp.eq.s32.totalorder %s13, 0
    %p131 = por %p129, %p130
    %p132 = scmp.ne.s32.totalorder %s124, %s126
    %p133 = scmp.eq.s32.totalorder %s18, 1
    %p134 = por %p132, %p133
    %p135 = scmp.ne.s32.totalorder %s126, %s127
    %p136 = scmp.eq.s32.totalorder %s18, 0
    %p137 = por %p135, %p136
    %p138 = scmp.ne.s32.totalorder %s126, %s127
    %p139 = scmp.eq.s32.totalorder %s19, 1
    %p140 = por %p138, %p139
    %p142 = scmp.ne.s32.totalorder %s127, %s141
    %p143 = scmp.eq.s32.totalorder %s19, 0
    %p144 = por %p142, %p143
    %s146 = sadd.s32 %s145, 1
    %p149 = scmp.eq.s32.totalorder %s13, 1
    %p150 = scmp.ne.s32.totalorder %s145, %s147
    %p151 = scmp.eq.s32.totalorder %s13, 0
    %p152 = por %p150, %p151
    %p153 = scmp.ne.s32.totalorder %s145, %s147
    %p154 = scmp.eq.s32.totalorder %s18, 1
    %p155 = por %p153, %p154
    %p156 = scmp.ne.s32.totalorder %s147, %s148
    %p157 = scmp.eq.s32.totalorder %s18, 0
    %p158 = por %p156, %p157
    %p159 = scmp.ne.s32.totalorder %s147, %s148
    %p160 = scmp.eq.s32.totalorder %s19, 1
    %p161 = por %p159, %p160
    %p163 = scmp.ne.s32.totalorder %s148, %s162
    %p164 = scmp.eq.s32.totalorder %s19, 0
    %p165 = por %p163, %p164
    %s167 = sadd.s32 %s166, 1
    %p170 = scmp.eq.s32.totalorder %s13, 1
    %p171 = scmp.ne.s32.totalorder %s166, %s168
    %p172 = scmp.eq.s32.totalorder %s13, 0
    %p173 = por %p171, %p172
    %p174 = scmp.ne.s32.totalorder %s166, %s168
    %p175 = scmp.eq.s32.totalorder %s18, 1
    %p176 = por %p174, %p175
    %p177 = scmp.ne.s32.totalorder %s168, %s169
    %p178 = scmp.eq.s32.totalorder %s18, 0
    %p179 = por %p177, %p178
    %p180 = scmp.ne.s32.totalorder %s168, %s169
    %p181 = scmp.eq.s32.totalorder %s19, 1
    %p182 = por %p180, %p181
    %p184 = scmp.ne.s32.totalorder %s169, %s183
    %p185 = scmp.eq.s32.totalorder %s19, 0
    %p186 = por %p184, %p185
    %s187 = ssub.s32 %s20, %s32
    %s188 = ssub.s32 %s21, %s28
    %s189 = sor.u32 %s187, %s188
    %p190 = scmp.eq.s32.totalorder %s189, 0
    %s192 = sadd.s32 %s191, 1
    %s193 = scalar_select %p190, %s191, %s192
    %p196 = pneg %p190
    %p197 = scmp.eq.s32.totalorder %s13, 1
    %p198 = por %p196, %p197
    %p199 = scmp.ne.s32.totalorder %s191, %s194
    %p200 = scmp.eq.s32.totalorder %s13, 0
    %p201 = por %p199, %p200
    %p202 = scmp.ne.s32.totalorder %s191, %s194
    %p203 = scmp.eq.s32.totalorder %s18, 1
    %p204 = por %p202, %p203
    %p205 = scmp.ne.s32.totalorder %s194, %s195
    %p206 = scmp.eq.s32.totalorder %s18, 0
    %p207 = por %p205, %p206
    %p208 = scmp.ne.s32.totalorder %s194, %s195
    %p209 = scmp.eq.s32.totalorder %s19, 1
    %p210 = por %p208, %p209
    %p212 = scmp.ne.s32.totalorder %s195, %s211
    %p213 = scmp.eq.s32.totalorder %s19, 0
    %p214 = por %p212, %p213
    %p215 = scmp.le.s32.totalorder 1, %s13
    %p216 = scmp.lt.s32.totalorder %s13, 3
    %p217 = pnand %p215, %p216
    %p218 = pneg %p217
    // Predicated region
    $region9: #{decoder_forward.1} parent=5 // pred_check
      _
    $region10: #{decoder_forward.1} parent=5 // pred_check_branch
      %220 = sbr.rel (%p217) target = $region12
    $region11: #{decoder_forward.1} parent=5 // pred_region
      %s221 = ssub.s32 %s13, 1
      // Predicated region
      $region13: #{decoder_forward.1} parent=11 // pred_check
        %p222 = pneg %p74
      $region14: #{decoder_forward.1} parent=11 // pred_check_branch
        %224 = sbr.rel (%p222) target = $region16
      $region15: #{decoder_forward.1} parent=11 // pred_region
        _
      $region16: #{decoder_forward.1} parent=11 // pred_fallthru
        _
      // Predicated region
      $region17: #{decoder_forward.1} parent=11 // pred_check
        %p225 = pneg %p95
      $region18: #{decoder_forward.1} parent=11 // pred_check_branch
        %227 = sbr.rel (%p225) target = $region20
      $region19: #{decoder_forward.1} parent=11 // pred_region
        _
      $region20: #{decoder_forward.1} parent=11 // pred_fallthru
        _
      // Predicated region
      $region21: #{decoder_forward.1} parent=11 // pred_check
        %p228 = pneg %p116
      $region22: #{decoder_forward.1} parent=11 // pred_check_branch
        %230 = sbr.rel (%p228) target = $region24
      $region23: #{decoder_forward.1} parent=11 // pred_region
        _
      $region24: #{decoder_forward.1} parent=11 // pred_fallthru
        _
      // Predicated region
      $region25: #{decoder_forward.1} parent=11 // pred_check
        %p231 = pneg %p137
      $region26: #{decoder_forward.1} parent=11 // pred_check_branch
        %233 = sbr.rel (%p231) target = $region28
      $region27: #{decoder_forward.1} parent=11 // pred_region
        _
      $region28: #{decoder_forward.1} parent=11 // pred_fallthru
        _
      // Predicated region
      $region29: #{decoder_forward.1} parent=11 // pred_check
        %p234 = pneg %p158
      $region30: #{decoder_forward.1} parent=11 // pred_check_branch
        %236 = sbr.rel (%p234) target = $region32
      $region31: #{decoder_forward.1} parent=11 // pred_region
        _
      $region32: #{decoder_forward.1} parent=11 // pred_fallthru
        _
      // Predicated region
      $region33: #{decoder_forward.1} parent=11 // pred_check
        %p237 = pneg %p179
      $region34: #{decoder_forward.1} parent=11 // pred_check_branch
        %239 = sbr.rel (%p237) target = $region36
      $region35: #{decoder_forward.1} parent=11 // pred_region
        _
      $region36: #{decoder_forward.1} parent=11 // pred_fallthru
        _
    $region12: #{decoder_forward.1} parent=5 // pred_fallthru
      _
    %p240 = scmp.lt.s32.totalorder %s13, 2
    // Predicated region
    $region37: #{decoder_forward.1} parent=5 // pred_check
      %p241 = pneg %p240
    $region38: #{decoder_forward.1} parent=5 // pred_check_branch
      %243 = sbr.rel (%p241) target = $region40
    $region39: #{decoder_forward.1} parent=5 // pred_region
      // Predicated region
      $region41: #{decoder_forward.1} parent=39 // pred_check
        %p244 = pneg %p47
      $region42: #{decoder_forward.1} parent=39 // pred_check_branch
        %246 = sbr.rel (%p244) target = $region44
      $region43: #{decoder_forward.1} parent=39 // pred_region
        %s247 = smul.u32 2, %s21
        %p248 = scmp.lt.s32.totalorder %s20, 1
        %s249 = scalar_select %p248, %s20, 1
        %p250 = scmp.lt.s32.totalorder %s247, 1
        %s251 = scalar_select %p250, %s247, 1
        %s252 = smul.addr %s249, 32
        %s253 = sadd.s32 %s251, %s252
        %s254 = smul.addr %s253, 8
        %s255 = scalar_lea.vmem %s0, %s254
        %s256 = smul.u32 2, %s21
      $region44: #{decoder_forward.1} parent=39 // pred_fallthru
        _
    $region40: #{decoder_forward.1} parent=5 // pred_fallthru
      _
    %p257 = scmp.le.s32.totalorder 1, %s13
    %p258 = scmp.lt.s32.totalorder %s13, 3
    %p259 = pnand %p257, %p258
    %p260 = pneg %p259
    // Predicated region
    $region45: #{decoder_forward.1} parent=5 // pred_check
      _
    $region46: #{decoder_forward.1} parent=5 // pred_check_branch
      %262 = sbr.rel (%p259) target = $region48
    $region47: #{decoder_forward.1} parent=5 // pred_region
      %s263 = ssub.s32 %s13, 1
      %s264 = smul.u32 2, %s23
      %p265 = scmp.lt.s32.totalorder %s22, 1
      %s266 = scalar_select %p265, %s22, 1
      %p267 = scmp.lt.s32.totalorder %s264, 1
      %s268 = scalar_select %p267, %s264, 1
      %s269 = smul.addr %s266, 32
      %s270 = sadd.s32 %s268, %s269
      %s271 = smul.addr %s270, 8
      %s272 = scalar_lea.vmem %s0, %s271
      %p273 = pneg %p53
      %p274 = pneg %p50
      %p275 = pneg %p74
      %p276 = pneg %p71
      %p277 = pneg %p95
      %p278 = pneg %p92
      %p279 = pneg %p116
      %p280 = pneg %p113
      %p281 = pneg %p137
      %p282 = pneg %p134
      %p283 = pneg %p158
      %p284 = pneg %p155
      %p285 = pneg %p179
      %p286 = pneg %p176
      %p287 = pneg %p207
      %p288 = pneg %p204
      %s289 = smul.u32 2, %s23
      %p290 = scmp.lt.s32.totalorder %s22, 1
      %s291 = scalar_select %p290, %s22, 1
      %p292 = scmp.lt.s32.totalorder %s289, 1
      %s293 = scalar_select %p292, %s289, 1
      %s294 = smul.addr %s291, 16
      %s295 = sadd.s32 %s293, %s294
      %s296 = smul.addr %s295, 8
      %s297 = scalar_lea.vmem %s7, %s296
      %s298 = smul.u32 2, %s23
      %p299 = scmp.lt.s32.totalorder %s22, 1
      %s300 = scalar_select %p299, %s22, 1
      %p301 = scmp.lt.s32.totalorder %s298, 1
      %s302 = scalar_select %p301, %s298, 1
      %s303 = smul.addr %s300, 32
      %s304 = sadd.s32 %s302, %s303
      %s305 = smul.addr %s304, 8
      %s306 = scalar_lea.vmem %s0, %s305
      %s307 = smul.u32 2, %s23
      %s308 = smul.u32 2, %s23
      %p309 = scmp.lt.s32.totalorder %s22, 1
      %s310 = scalar_select %p309, %s22, 1
      %p311 = scmp.lt.s32.totalorder %s308, 1
      %s312 = scalar_select %p311, %s308, 1
      %s313 = smul.addr %s310, 16
      %s314 = sadd.s32 %s312, %s313
      %s315 = smul.addr %s314, 8
      %s316 = scalar_lea.vmem %s7, %s315
      %s317 = smul.u32 2, %s23
      %v319 = vld [vmem:[%s306] sm:$0xff]
      %v320 = vld [vmem:[%s306 + $0x8] sm:$0xff]
      %v321 = vld [vmem:[%s306 + $0x10] sm:$0xff]
      %v322 = vld [vmem:[%s306 + $0x18] sm:$0xff]
      %v323 = vld [vmem:[%s306 + $0x20] sm:$0xff]
      %v324 = vld [vmem:[%s306 + $0x28] sm:$0xff]
      %v325 = vld [vmem:[%s306 + $0x30] sm:$0xff]
      %v326 = vld [vmem:[%s306 + $0x38] sm:$0xff]
      %v327 = vld [vmem:[%s306 + $0x40] sm:$0xff]
      %v328 = vld [vmem:[%s306 + $0x48] sm:$0xff]
      %v329 = vld [vmem:[%s306 + $0x50] sm:$0xff]
      %v330 = vld [vmem:[%s306 + $0x58] sm:$0xff]
      %v331 = vld [vmem:[%s306 + $0x60] sm:$0xff]
      %v332 = vld [vmem:[%s306 + $0x68] sm:$0xff]
      %v333 = vld [vmem:[%s306 + $0x70] sm:$0xff]
      %v334 = vld [vmem:[%s306 + $0x78] sm:$0xff]
      %v335 = vld [vmem:[%s306 + $0x80] sm:$0xff]
      %v336 = vld [vmem:[%s306 + $0x88] sm:$0xff]
      %v337 = vld [vmem:[%s306 + $0x90] sm:$0xff]
      %v338 = vld [vmem:[%s306 + $0x98] sm:$0xff]
      %v339 = vld [vmem:[%s306 + $0xa0] sm:$0xff]
      %v340 = vld [vmem:[%s306 + $0xa8] sm:$0xff]
      %v341 = vld [vmem:[%s306 + $0xb0] sm:$0xff]
      %v342 = vld [vmem:[%s306 + $0xb8] sm:$0xff]
      %v343 = vld [vmem:[%s306 + $0xc0] sm:$0xff]
      %v344 = vld [vmem:[%s306 + $0xc8] sm:$0xff]
      %v345 = vld [vmem:[%s306 + $0xd0] sm:$0xff]
      %v346 = vld [vmem:[%s306 + $0xd8] sm:$0xff]
      %v347 = vld [vmem:[%s306 + $0xe0] sm:$0xff]
      %v348 = vld [vmem:[%s306 + $0xe8] sm:$0xff]
      %v349 = vld [vmem:[%s306 + $0xf0] sm:$0xff]
      %v350 = vld [vmem:[%s306 + $0xf8] sm:$0xff]
      %v351 = vpack.c.bf16 %v321, %v319
      %v352 = vpack.c.bf16 %v322, %v320
      %v353 = vpack.c.bf16 %v325, %v323
      %v354 = vpack.c.bf16 %v326, %v324
      %v355 = vpack.c.bf16 %v329, %v327
      %v356 = vpack.c.bf16 %v330, %v328
      %v357 = vpack.c.bf16 %v333, %v331
      %v358 = vpack.c.bf16 %v334, %v332
      %v359 = vpack.c.bf16 %v337, %v335
      %v360 = vpack.c.bf16 %v338, %v336
      %v361 = vpack.c.bf16 %v341, %v339
      %v362 = vpack.c.bf16 %v342, %v340
      %v363 = vpack.c.bf16 %v345, %v343
      %v364 = vpack.c.bf16 %v346, %v344
      %v365 = vpack.c.bf16 %v349, %v347
      %v366 = vpack.c.bf16 %v350, %v348
      %v367 = vld [vmem:[%s1] sm:$0xf]
      %v368 = vld [vmem:[%s1 + $0x4] sm:$0xf]
      %v369 = vld [vmem:[%s1 + $0x8] sm:$0xf]
      %v370 = vld [vmem:[%s1 + $0xc] sm:$0xf]
      %v371 = vld [vmem:[%s1 + $0x10] sm:$0xf]
      %v372 = vld [vmem:[%s1 + $0x14] sm:$0xf]
      %v373 = vld [vmem:[%s1 + $0x18] sm:$0xf]
      %v374 = vld [vmem:[%s1 + $0x1c] sm:$0xf]
      %v375 = vld [vmem:[%s1 + $0x20] sm:$0xf]
      %v376 = vld [vmem:[%s1 + $0x24] sm:$0xf]
      %v377 = vld [vmem:[%s1 + $0x28] sm:$0xf]
      %v378 = vld [vmem:[%s1 + $0x2c] sm:$0xf]
      %v379 = vld [vmem:[%s1 + $0x30] sm:$0xf]
      %v380 = vld [vmem:[%s1 + $0x34] sm:$0xf]
      %v381 = vld [vmem:[%s1 + $0x38] sm:$0xf]
      %v382 = vld [vmem:[%s1 + $0x3c] sm:$0xf]
      %v383 = vld [vmem:[%s1 + $0x40] sm:$0xf]
      %v384 = vld [vmem:[%s1 + $0x44] sm:$0xf]
      %v385 = vld [vmem:[%s1 + $0x48] sm:$0xf]
      %v386 = vld [vmem:[%s1 + $0x4c] sm:$0xf]
      %v387 = vld [vmem:[%s1 + $0x50] sm:$0xf]
      %v388 = vld [vmem:[%s1 + $0x54] sm:$0xf]
      %v389 = vld [vmem:[%s1 + $0x58] sm:$0xf]
      %v390 = vld [vmem:[%s1 + $0x5c] sm:$0xf]
      %v391 = vld [vmem:[%s1 + $0x60] sm:$0xf]
      %v392 = vld [vmem:[%s1 + $0x64] sm:$0xf]
      %v393 = vld [vmem:[%s1 + $0x68] sm:$0xf]
      %v394 = vld [vmem:[%s1 + $0x6c] sm:$0xf]
      %v395 = vld [vmem:[%s1 + $0x70] sm:$0xf]
      %v396 = vld [vmem:[%s1 + $0x74] sm:$0xf]
      %v397 = vld [vmem:[%s1 + $0x78] sm:$0xf]
      %v398 = vld [vmem:[%s1 + $0x7c] sm:$0xf]
      %v431 = vunpack.c.l.b16 %v367
      %v432 = vunpack.c.l.b16 %v368
      %v433 = vunpack.c.l.b16 %v369
      %v434 = vunpack.c.l.b16 %v370
      %v435 = vunpack.c.l.b16 %v371
      %v436 = vunpack.c.l.b16 %v372
      %v437 = vunpack.c.l.b16 %v373
      %v438 = vunpack.c.l.b16 %v374
      %v439 = vunpack.c.l.b16 %v375
      %v440 = vunpack.c.l.b16 %v376
      %v441 = vunpack.c.l.b16 %v377
      %v442 = vunpack.c.l.b16 %v378
      %v443 = vunpack.c.l.b16 %v379
      %v444 = vunpack.c.l.b16 %v380
      %v445 = vunpack.c.l.b16 %v381
      %v446 = vunpack.c.l.b16 %v382
      %v447 = vunpack.c.l.b16 %v383
      %v448 = vunpack.c.l.b16 %v384
      %v449 = vunpack.c.l.b16 %v385
      %v450 = vunpack.c.l.b16 %v386
      %v451 = vunpack.c.l.b16 %v387
      %v452 = vunpack.c.l.b16 %v388
      %v453 = vunpack.c.l.b16 %v389
      %v454 = vunpack.c.l.b16 %v390
      %v455 = vunpack.c.l.b16 %v391
      %v456 = vunpack.c.l.b16 %v392
      %v457 = vunpack.c.l.b16 %v393
      %v458 = vunpack.c.l.b16 %v394
      %v459 = vunpack.c.l.b16 %v395
      %v460 = vunpack.c.l.b16 %v396
      %v461 = vunpack.c.l.b16 %v397
      %v462 = vunpack.c.l.b16 %v398
      %v463 = vpack.c.b16 %v432, %v431
      %v464 = vpack.c.b16 %v434, %v433
      %v465 = vpack.c.b16 %v436, %v435
      %v466 = vpack.c.b16 %v438, %v437
      %v467 = vpack.c.b16 %v440, %v439
      %v468 = vpack.c.b16 %v442, %v441
      %v469 = vpack.c.b16 %v444, %v443
      %v470 = vpack.c.b16 %v446, %v445
      %v471 = vpack.c.b16 %v448, %v447
      %v472 = vpack.c.b16 %v450, %v449
      %v473 = vpack.c.b16 %v452, %v451
      %v474 = vpack.c.b16 %v454, %v453
      %v475 = vpack.c.b16 %v456, %v455
      %v476 = vpack.c.b16 %v458, %v457
      %v477 = vpack.c.b16 %v460, %v459
      %v478 = vpack.c.b16 %v462, %v461
      %495 = vmatprep.subr.bf16.mxu0 %v352
      %496 = vmatpush1.bf16.msra.mxu0 %v351
      %497 = vmatprep.subr.bf16.mxu0 %v354
      %498 = vmatpush1.bf16.msra.mxu0 %v353
      %499 = vmatprep.subr.bf16.mxu0 %v356
      %500 = vmatpush1.bf16.msra.mxu0 %v355
      %501 = vmatprep.subr.bf16.mxu0 %v358
      %502 = vmatpush1.bf16.msra.mxu0 %v357
      %503 = vmatprep.subr.bf16.mxu0 %v360
      %504 = vmatpush1.bf16.msra.mxu0 %v359
      %505 = vmatprep.subr.bf16.mxu0 %v362
      %506 = vmatpush1.bf16.msra.mxu0 %v361
      %507 = vmatprep.subr.bf16.mxu0 %v364
      %508 = vmatpush1.bf16.msra.mxu0 %v363
      %509 = vmatprep.subr.bf16.mxu0 %v366
      %510 = vmatpush1.bf16.msra.mxu0 %v365
      %511 = vmatprep.subr.bf16.mxu0 0
      %512 = vmatpush1.bf16.msra.mxu0 0
      %513 = vmatprep.subr.bf16.mxu0 0
      %514 = vmatpush1.bf16.msra.mxu0 0
      %515 = vmatprep.subr.bf16.mxu0 0
      %516 = vmatpush1.bf16.msra.mxu0 0
      %517 = vmatprep.subr.bf16.mxu0 0
      %518 = vmatpush1.bf16.msra.mxu0 0
      %519 = vmatprep.subr.bf16.mxu0 0
      %520 = vmatpush1.bf16.msra.mxu0 0
      %521 = vmatprep.subr.bf16.mxu0 0
      %522 = vmatpush1.bf16.msra.mxu0 0
      %523 = vmatprep.subr.bf16.mxu0 0
      %524 = vmatpush1.bf16.msra.mxu0 0
      %525 = vmatprep.subr.bf16.mxu0 0
      %526 = vmatpush1.bf16.msra.mxu0 0
      %527 = vmatprep.mubr.bf16.mxu0 0
      %528 = vmatmul.mubr.bf16.gmra.mrb[0].mxu0 %v463
      %v529 = vpop.f32.mrb[0].mxu0
      %v530 = vadd.f32 0.0, %v529
      %v531 = vpop.f32.mrb[0].mxu0
      %v532 = vadd.f32 0.0, %v531
      %v533 = vpop.f32.mrb[0].mxu0
      %v534 = vadd.f32 0.0, %v533
      %v535 = vpop.f32.mrb[0].mxu0
      %v536 = vadd.f32 0.0, %v535
      %537 = vmatprep.mubr.bf16.mxu0 0
      %538 = vmatmul.mubr.bf16.gmra.mrb[0].mxu0 %v464
      %v539 = vpop.f32.mrb[0].mxu0
      %v540 = vadd.f32 0.0, %v539
      %v541 = vpop.f32.mrb[0].mxu0
      %v542 = vadd.f32 0.0, %v541
      %v543 = vpop.f32.mrb[0].mxu0
      %v544 = vadd.f32 0.0, %v543
      %v545 = vpop.f32.mrb[0].mxu0
      %v546 = vadd.f32 0.0, %v545
      %547 = vmatprep.mubr.bf16.mxu0 0
      %548 = vmatmul.mubr.bf16.gmra.mrb[0].mxu0 %v465
      %v549 = vpop.f32.mrb[0].mxu0
      %v550 = vadd.f32 0.0, %v549
      %v551 = vpop.f32.mrb[0].mxu0
      %v552 = vadd.f32 0.0, %v551
      %v553 = vpop.f32.mrb[0].mxu0
      %v554 = vadd.f32 0.0, %v553
      %v555 = vpop.f32.mrb[0].mxu0
      %v556 = vadd.f32 0.0, %v555
      %557 = vmatprep.mubr.bf16.mxu0 0
      %558 = vmatmul.mubr.bf16.gmra.mrb[0].mxu0 %v466
      %v559 = vpop.f32.mrb[0].mxu0
      %v560 = vadd.f32 0.0, %v559
      %v561 = vpop.f32.mrb[0].mxu0
      %v562 = vadd.f32 0.0, %v561
      %v563 = vpop.f32.mrb[0].mxu0
      %v564 = vadd.f32 0.0, %v563
      %v565 = vpop.f32.mrb[0].mxu0
      %v566 = vadd.f32 0.0, %v565
      %567 = vmatprep.mubr.bf16.mxu0 0
      %568 = vmatmul.mubr.bf16.gmra.mrb[0].mxu0 %v467
      %v569 = vpop.f32.mrb[0].mxu0
      %v570 = vadd.f32 0.0, %v569
      %v571 = vpop.f32.mrb[0].mxu0
      %v572 = vadd.f32 0.0, %v571
      %v573 = vpop.f32.mrb[0].mxu0
      %v574 = vadd.f32 0.0, %v573
      %v575 = vpop.f32.mrb[0].mxu0
      %v576 = vadd.f32 0.0, %v575
      %577 = vmatprep.mubr.bf16.mxu0 0
      %578 = vmatmul.mubr.bf16.gmra.mrb[0].mxu0 %v468
      %v579 = vpop.f32.mrb[0].mxu0
      %v580 = vadd.f32 0.0, %v579
      %v581 = vpop.f32.mrb[0].mxu0
      %v582 = vadd.f32 0.0, %v581
      %v583 = vpop.f32.mrb[0].mxu0
      %v584 = vadd.f32 0.0, %v583
      %v585 = vpop.f32.mrb[0].mxu0
      %v586 = vadd.f32 0.0, %v585
      %587 = vmatprep.mubr.bf16.mxu0 0
      %588 = vmatmul.mubr.bf16.gmra.mrb[0].mxu0 %v469
      %v589 = vpop.f32.mrb[0].mxu0
      %v590 = vadd.f32 0.0, %v589
      %v591 = vpop.f32.mrb[0].mxu0
      %v592 = vadd.f32 0.0, %v591
      %v593 = vpop.f32.mrb[0].mxu0
      %v594 = vadd.f32 0.0, %v593
      %v595 = vpop.f32.mrb[0].mxu0
      %v596 = vadd.f32 0.0, %v595
      %597 = vmatprep.mubr.bf16.mxu0 0
      %598 = vmatmul.mubr.bf16.gmra.mrb[0].mxu0 %v470
      %v599 = vpop.f32.mrb[0].mxu0
      %v600 = vadd.f32 0.0, %v599
      %v601 = vpop.f32.mrb[0].mxu0
      %v602 = vadd.f32 0.0, %v601
      %v603 = vpop.f32.mrb[0].mxu0
      %v604 = vadd.f32 0.0, %v603
      %v605 = vpop.f32.mrb[0].mxu0
      %v606 = vadd.f32 0.0, %v605
      %607 = vmatprep.mubr.bf16.mxu0 0
      %608 = vmatmul.mubr.bf16.gmra.mrb[0].mxu0 %v471
      %v609 = vpop.f32.mrb[0].mxu0
      %v610 = vadd.f32 0.0, %v609
      %v611 = vpop.f32.mrb[0].mxu0
      %v612 = vadd.f32 0.0, %v611
      %v613 = vpop.f32.mrb[0].mxu0
      %v614 = vadd.f32 0.0, %v613
      %v615 = vpop.f32.mrb[0].mxu0
      %v616 = vadd.f32 0.0, %v615
      %617 = vmatprep.mubr.bf16.mxu0 0
      %618 = vmatmul.mubr.bf16.gmra.mrb[0].mxu0 %v472
      %v619 = vpop.f32.mrb[0].mxu0
      %v620 = vadd.f32 0.0, %v619
      %v621 = vpop.f32.mrb[0].mxu0
      %v622 = vadd.f32 0.0, %v621
      %v623 = vpop.f32.mrb[0].mxu0
      %v624 = vadd.f32 0.0, %v623
      %v625 = vpop.f32.mrb[0].mxu0
      %v626 = vadd.f32 0.0, %v625
      %627 = vmatprep.mubr.bf16.mxu0 0
      %628 = vmatmul.mubr.bf16.gmra.mrb[0].mxu0 %v473
      %v629 = vpop.f32.mrb[0].mxu0
      %v630 = vadd.f32 0.0, %v629
      %v631 = vpop.f32.mrb[0].mxu0
      %v632 = vadd.f32 0.0, %v631
      %v633 = vpop.f32.mrb[0].mxu0
      %v634 = vadd.f32 0.0, %v633
      %v635 = vpop.f32.mrb[0].mxu0
      %v636 = vadd.f32 0.0, %v635
      %637 = vmatprep.mubr.bf16.mxu0 0
      %638 = vmatmul.mubr.bf16.gmra.mrb[0].mxu0 %v474
      %v639 = vpop.f32.mrb[0].mxu0
      %v640 = vadd.f32 0.0, %v639
      %v641 = vpop.f32.mrb[0].mxu0
      %v642 = vadd.f32 0.0, %v641
      %v643 = vpop.f32.mrb[0].mxu0
      %v644 = vadd.f32 0.0, %v643
      %v645 = vpop.f32.mrb[0].mxu0
      %v646 = vadd.f32 0.0, %v645
      %647 = vmatprep.mubr.bf16.mxu0 0
      %648 = vmatmul.mubr.bf16.gmra.mrb[0].mxu0 %v475
      %v649 = vpop.f32.mrb[0].mxu0
      %v650 = vadd.f32 0.0, %v649
      %v651 = vpop.f32.mrb[0].mxu0
      %v652 = vadd.f32 0.0, %v651
      %v653 = vpop.f32.mrb[0].mxu0
      %v654 = vadd.f32 0.0, %v653
      %v655 = vpop.f32.mrb[0].mxu0
      %v656 = vadd.f32 0.0, %v655
      %657 = vmatprep.mubr.bf16.mxu0 0
      %658 = vmatmul.mubr.bf16.gmra.mrb[0].mxu0 %v476
      %v659 = vpop.f32.mrb[0].mxu0
      %v660 = vadd.f32 0.0, %v659
      %v661 = vpop.f32.mrb[0].mxu0
      %v662 = vadd.f32 0.0, %v661
      %v663 = vpop.f32.mrb[0].mxu0
      %v664 = vadd.f32 0.0, %v663
      %v665 = vpop.f32.mrb[0].mxu0
      %v666 = vadd.f32 0.0, %v665
      %667 = vmatprep.mubr.bf16.mxu0 0
      %668 = vmatmul.mubr.bf16.gmra.mrb[0].mxu0 %v477
      %v669 = vpop.f32.mrb[0].mxu0
      %v670 = vadd.f32 0.0, %v669
      %v671 = vpop.f32.mrb[0].mxu0
      %v672 = vadd.f32 0.0, %v671
      %v673 = vpop.f32.mrb[0].mxu0
      %v674 = vadd.f32 0.0, %v673
      %v675 = vpop.f32.mrb[0].mxu0
      %v676 = vadd.f32 0.0, %v675
      %677 = vmatprep.mubr.bf16.mxu0 0
      %678 = vmatmul.mubr.bf16.gmra.mrb[0].mxu0 %v478
      %v679 = vpop.f32.mrb[0].mxu0
      %v680 = vadd.f32 0.0, %v679
      %v681 = vpop.f32.mrb[0].mxu0
      %v682 = vadd.f32 0.0, %v681
      %v683 = vpop.f32.mrb[0].mxu0
      %v684 = vadd.f32 0.0, %v683
      %v685 = vpop.f32.mrb[0].mxu0
      %v686 = vadd.f32 0.0, %v685
      %687 = vdwg.mxu0
      %v688 = vpack.c.bf16 %v534, %v530
      %v689 = vpack.c.bf16 %v536, %v532
      %v690 = vpack.c.bf16 %v544, %v540
      %v691 = vpack.c.bf16 %v546, %v542
      %v692 = vpack.c.bf16 %v554, %v550
      %v693 = vpack.c.bf16 %v556, %v552
      %v694 = vpack.c.bf16 %v564, %v560
      %v695 = vpack.c.bf16 %v566, %v562
      %v696 = vpack.c.bf16 %v574, %v570
      %v697 = vpack.c.bf16 %v576, %v572
      %v698 = vpack.c.bf16 %v584, %v580
      %v699 = vpack.c.bf16 %v586, %v582
      %v700 = vpack.c.bf16 %v594, %v590
      %v701 = vpack.c.bf16 %v596, %v592
      %v702 = vpack.c.bf16 %v604, %v600
      %v703 = vpack.c.bf16 %v606, %v602
      %v704 = vpack.c.bf16 %v614, %v610
      %v705 = vpack.c.bf16 %v616, %v612
      %v706 = vpack.c.bf16 %v624, %v620
      %v707 = vpack.c.bf16 %v626, %v622
      %v708 = vpack.c.bf16 %v634, %v630
      %v709 = vpack.c.bf16 %v636, %v632
      %v710 = vpack.c.bf16 %v644, %v640
      %v711 = vpack.c.bf16 %v646, %v642
      %v712 = vpack.c.bf16 %v654, %v650
      %v713 = vpack.c.bf16 %v656, %v652
      %v714 = vpack.c.bf16 %v664, %v660
      %v715 = vpack.c.bf16 %v666, %v662
      %v716 = vpack.c.bf16 %v674, %v670
      %v717 = vpack.c.bf16 %v676, %v672
      %v718 = vpack.c.bf16 %v684, %v680
      %v719 = vpack.c.bf16 %v686, %v682
      %v720 = vld [vmem:[%s2] sm:$0xf]
      %v721 = vld [vmem:[%s2 + $0x4] sm:$0xf]
      %v722 = vld [vmem:[%s2 + $0x8] sm:$0xf]
      %v723 = vld [vmem:[%s2 + $0xc] sm:$0xf]
      %v724 = vld [vmem:[%s2 + $0x10] sm:$0xf]
      %v725 = vld [vmem:[%s2 + $0x14] sm:$0xf]
      %v726 = vld [vmem:[%s2 + $0x18] sm:$0xf]
      %v727 = vld [vmem:[%s2 + $0x1c] sm:$0xf]
      %v728 = vld [vmem:[%s2 + $0x20] sm:$0xf]
      %v729 = vld [vmem:[%s2 + $0x24] sm:$0xf]
      %v730 = vld [vmem:[%s2 + $0x28] sm:$0xf]
      %v731 = vld [vmem:[%s2 + $0x2c] sm:$0xf]
      %v732 = vld [vmem:[%s2 + $0x30] sm:$0xf]
      %v733 = vld [vmem:[%s2 + $0x34] sm:$0xf]
      %v734 = vld [vmem:[%s2 + $0x38] sm:$0xf]
      %v735 = vld [vmem:[%s2 + $0x3c] sm:$0xf]
      %v736 = vld [vmem:[%s2 + $0x40] sm:$0xf]
      %v737 = vld [vmem:[%s2 + $0x44] sm:$0xf]
      %v738 = vld [vmem:[%s2 + $0x48] sm:$0xf]
      %v739 = vld [vmem:[%s2 + $0x4c] sm:$0xf]
      %v740 = vld [vmem:[%s2 + $0x50] sm:$0xf]
      %v741 = vld [vmem:[%s2 + $0x54] sm:$0xf]
      %v742 = vld [vmem:[%s2 + $0x58] sm:$0xf]
      %v743 = vld [vmem:[%s2 + $0x5c] sm:$0xf]
      %v744 = vld [vmem:[%s2 + $0x60] sm:$0xf]
      %v745 = vld [vmem:[%s2 + $0x64] sm:$0xf]
      %v746 = vld [vmem:[%s2 + $0x68] sm:$0xf]
      %v747 = vld [vmem:[%s2 + $0x6c] sm:$0xf]
      %v748 = vld [vmem:[%s2 + $0x70] sm:$0xf]
      %v749 = vld [vmem:[%s2 + $0x74] sm:$0xf]
      %v750 = vld [vmem:[%s2 + $0x78] sm:$0xf]
      %v751 = vld [vmem:[%s2 + $0x7c] sm:$0xf]
      %753 = vset.pattern.permute.xlu0 0
      %754 = vperm.xlu0 %753, %v720
      %v755 = vpop.permute.xlu0 %754
      %v758 = vunpack.c.l.s4 839922192
      %v759 = vunpack.c.0.s8 %v758
      %v760 = vlaneseq
      %v761 = vshrl.u32 %v760, 7
      %v762 = vsub.s32 %v759, %v761
      %v763 = vrot.slane %v755, %v762
      %765 = vset.pattern.permute.xlu0 0
      %766 = vperm.xlu0 %765, %v721
      %v767 = vpop.permute.xlu0 %766
      %v770 = vunpack.c.l.s4 839922192
      %v771 = vunpack.c.0.s8 %v770
      %v772 = vlaneseq
      %v773 = vshrl.u32 %v772, 7
      %v774 = vsub.s32 %v771, %v773
      %v775 = vrot.slane %v767, %v774
      %777 = vset.pattern.permute.xlu0 0
      %778 = vperm.xlu0 %777, %v722
      %v779 = vpop.permute.xlu0 %778
      %v782 = vunpack.c.l.s4 839922192
      %v783 = vunpack.c.0.s8 %v782
      %v784 = vlaneseq
      %v785 = vshrl.u32 %v784, 7
      %v786 = vsub.s32 %v783, %v785
      %v787 = vrot.slane %v779, %v786
      %789 = vset.pattern.permute.xlu0 0
      %790 = vperm.xlu0 %789, %v723
      %v791 = vpop.permute.xlu0 %790
      %v794 = vunpack.c.l.s4 839922192
      %v795 = vunpack.c.0.s8 %v794
      %v796 = vlaneseq
      %v797 = vshrl.u32 %v796, 7
      %v798 = vsub.s32 %v795, %v797
      %v799 = vrot.slane %v791, %v798
      %801 = vset.pattern.permute.xlu0 0
      %802 = vperm.xlu0 %801, %v724
      %v803 = vpop.permute.xlu0 %802
      %v806 = vunpack.c.l.s4 839922192
      %v807 = vunpack.c.0.s8 %v806
      %v808 = vlaneseq
      %v809 = vshrl.u32 %v808, 7
      %v810 = vsub.s32 %v807, %v809
      %v811 = vrot.slane %v803, %v810
      %813 = vset.pattern.permute.xlu0 0
      %814 = vperm.xlu0 %813, %v725
      %v815 = vpop.permute.xlu0 %814
      %v818 = vunpack.c.l.s4 839922192
      %v819 = vunpack.c.0.s8 %v818
      %v820 = vlaneseq
      %v821 = vshrl.u32 %v820, 7
      %v822 = vsub.s32 %v819, %v821
      %v823 = vrot.slane %v815, %v822
      %825 = vset.pattern.permute.xlu0 0
      %826 = vperm.xlu0 %825, %v726
      %v827 = vpop.permute.xlu0 %826
      %v830 = vunpack.c.l.s4 839922192
      %v831 = vunpack.c.0.s8 %v830
      %v832 = vlaneseq
      %v833 = vshrl.u32 %v832, 7
      %v834 = vsub.s32 %v831, %v833
      %v835 = vrot.slane %v827, %v834
      %837 = vset.pattern.permute.xlu0 0
      %838 = vperm.xlu0 %837, %v727
      %v839 = vpop.permute.xlu0 %838
      %v842 = vunpack.c.l.s4 839922192
      %v843 = vunpack.c.0.s8 %v842
      %v844 = vlaneseq
      %v845 = vshrl.u32 %v844, 7
      %v846 = vsub.s32 %v843, %v845
      %v847 = vrot.slane %v839, %v846
      %849 = vset.pattern.permute.xlu0 0
      %850 = vperm.xlu0 %849, %v728
      %v851 = vpop.permute.xlu0 %850
      %v854 = vunpack.c.l.s4 839922192
      %v855 = vunpack.c.0.s8 %v854
      %v856 = vlaneseq
      %v857 = vshrl.u32 %v856, 7
      %v858 = vsub.s32 %v855, %v857
      %v859 = vrot.slane %v851, %v858
      %861 = vset.pattern.permute.xlu0 0
      %862 = vperm.xlu0 %861, %v729
      %v863 = vpop.permute.xlu0 %862
      %v866 = vunpack.c.l.s4 839922192
      %v867 = vunpack.c.0.s8 %v866
      %v868 = vlaneseq
      %v869 = vshrl.u32 %v868, 7
      %v870 = vsub.s32 %v867, %v869
      %v871 = vrot.slane %v863, %v870
      %873 = vset.pattern.permute.xlu0 0
      %874 = vperm.xlu0 %873, %v730
      %v875 = vpop.permute.xlu0 %874
      %v878 = vunpack.c.l.s4 839922192
      %v879 = vunpack.c.0.s8 %v878
      %v880 = vlaneseq
      %v881 = vshrl.u32 %v880, 7
      %v882 = vsub.s32 %v879, %v881
      %v883 = vrot.slane %v875, %v882
      %885 = vset.pattern.permute.xlu0 0
      %886 = vperm.xlu0 %885, %v731
      %v887 = vpop.permute.xlu0 %886
      %v890 = vunpack.c.l.s4 839922192
      %v891 = vunpack.c.0.s8 %v890
      %v892 = vlaneseq
      %v893 = vshrl.u32 %v892, 7
      %v894 = vsub.s32 %v891, %v893
      %v895 = vrot.slane %v887, %v894
      %897 = vset.pattern.permute.xlu0 0
      %898 = vperm.xlu0 %897, %v732
      %v899 = vpop.permute.xlu0 %898
      %v902 = vunpack.c.l.s4 839922192
      %v903 = vunpack.c.0.s8 %v902
      %v904 = vlaneseq
      %v905 = vshrl.u32 %v904, 7
      %v906 = vsub.s32 %v903, %v905
      %v907 = vrot.slane %v899, %v906
      %909 = vset.pattern.permute.xlu0 0
      %910 = vperm.xlu0 %909, %v733
      %v911 = vpop.permute.xlu0 %910
      %v914 = vunpack.c.l.s4 839922192
      %v915 = vunpack.c.0.s8 %v914
      %v916 = vlaneseq
      %v917 = vshrl.u32 %v916, 7
      %v918 = vsub.s32 %v915, %v917
      %v919 = vrot.slane %v911, %v918
      %921 = vset.pattern.permute.xlu0 0
      %922 = vperm.xlu0 %921, %v734
      %v923 = vpop.permute.xlu0 %922
      %v926 = vunpack.c.l.s4 839922192
      %v927 = vunpack.c.0.s8 %v926
      %v928 = vlaneseq
      %v929 = vshrl.u32 %v928, 7
      %v930 = vsub.s32 %v927, %v929
      %v931 = vrot.slane %v923, %v930
      %933 = vset.pattern.permute.xlu0 0
      %934 = vperm.xlu0 %933, %v735
      %v935 = vpop.permute.xlu0 %934
      %v938 = vunpack.c.l.s4 839922192
      %v939 = vunpack.c.0.s8 %v938
      %v940 = vlaneseq
      %v941 = vshrl.u32 %v940, 7
      %v942 = vsub.s32 %v939, %v941
      %v943 = vrot.slane %v935, %v942
      %945 = vset.pattern.permute.xlu0 0
      %946 = vperm.xlu0 %945, %v736
      %v947 = vpop.permute.xlu0 %946
      %v950 = vunpack.c.l.s4 839922192
      %v951 = vunpack.c.0.s8 %v950
      %v952 = vlaneseq
      %v953 = vshrl.u32 %v952, 7
      %v954 = vsub.s32 %v951, %v953
      %v955 = vrot.slane %v947, %v954
      %957 = vset.pattern.permute.xlu0 0
      %958 = vperm.xlu0 %957, %v737
      %v959 = vpop.permute.xlu0 %958
      %v962 = vunpack.c.l.s4 839922192
      %v963 = vunpack.c.0.s8 %v962
      %v964 = vlaneseq
      %v965 = vshrl.u32 %v964, 7
      %v966 = vsub.s32 %v963, %v965
      %v967 = vrot.slane %v959, %v966
      %969 = vset.pattern.permute.xlu0 0
      %970 = vperm.xlu0 %969, %v738
      %v971 = vpop.permute.xlu0 %970
      %v974 = vunpack.c.l.s4 839922192
      %v975 = vunpack.c.0.s8 %v974
      %v976 = vlaneseq
      %v977 = vshrl.u32 %v976, 7
      %v978 = vsub.s32 %v975, %v977
      %v979 = vrot.slane %v971, %v978
      %981 = vset.pattern.permute.xlu0 0
      %982 = vperm.xlu0 %981, %v739
      %v983 = vpop.permute.xlu0 %982
      %v986 = vunpack.c.l.s4 839922192
      %v987 = vunpack.c.0.s8 %v986
      %v988 = vlaneseq
      %v989 = vshrl.u32 %v988, 7
      %v990 = vsub.s32 %v987, %v989
      %v991 = vrot.slane %v983, %v990
      %993 = vset.pattern.permute.xlu0 0
      %994 = vperm.xlu0 %993, %v740
      %v995 = vpop.permute.xlu0 %994
      %v998 = vunpack.c.l.s4 839922192
      %v999 = vunpack.c.0.s8 %v998
      %v1000 = vlaneseq
      %v1001 = vshrl.u32 %v1000, 7
      %v1002 = vsub.s32 %v999, %v1001
      %v1003 = vrot.slane %v995, %v1002
      %1005 = vset.pattern.permute.xlu0 0
      %1006 = vperm.xlu0 %1005, %v741
      %v1007 = vpop.permute.xlu0 %1006
      %v1010 = vunpack.c.l.s4 839922192
      %v1011 = vunpack.c.0.s8 %v1010
      %v1012 = vlaneseq
      %v1013 = vshrl.u32 %v1012, 7
      %v1014 = vsub.s32 %v1011, %v1013
      %v1015 = vrot.slane %v1007, %v1014
      %1017 = vset.pattern.permute.xlu0 0
      %1018 = vperm.xlu0 %1017, %v742
      %v1019 = vpop.permute.xlu0 %1018
      %v1022 = vunpack.c.l.s4 839922192
      %v1023 = vunpack.c.0.s8 %v1022
      %v1024 = vlaneseq
      %v1025 = vshrl.u32 %v1024, 7
      %v1026 = vsub.s32 %v1023, %v1025
      %v1027 = vrot.slane %v1019, %v1026
      %1029 = vset.pattern.permute.xlu0 0
      %1030 = vperm.xlu0 %1029, %v743
      %v1031 = vpop.permute.xlu0 %1030
      %v1034 = vunpack.c.l.s4 839922192
      %v1035 = vunpack.c.0.s8 %v1034
      %v1036 = vlaneseq
      %v1037 = vshrl.u32 %v1036, 7
      %v1038 = vsub.s32 %v1035, %v1037
      %v1039 = vrot.slane %v1031, %v1038
      %1041 = vset.pattern.permute.xlu0 0
      %1042 = vperm.xlu0 %1041, %v744
      %v1043 = vpop.permute.xlu0 %1042
      %v1046 = vunpack.c.l.s4 839922192
      %v1047 = vunpack.c.0.s8 %v1046
      %v1048 = vlaneseq
      %v1049 = vshrl.u32 %v1048, 7
      %v1050 = vsub.s32 %v1047, %v1049
      %v1051 = vrot.slane %v1043, %v1050
      %1053 = vset.pattern.permute.xlu0 0
      %1054 = vperm.xlu0 %1053, %v745
      %v1055 = vpop.permute.xlu0 %1054
      %v1058 = vunpack.c.l.s4 839922192
      %v1059 = vunpack.c.0.s8 %v1058
      %v1060 = vlaneseq
      %v1061 = vshrl.u32 %v1060, 7
      %v1062 = vsub.s32 %v1059, %v1061
      %v1063 = vrot.slane %v1055, %v1062
      %1065 = vset.pattern.permute.xlu0 0
      %1066 = vperm.xlu0 %1065, %v746
      %v1067 = vpop.permute.xlu0 %1066
      %v1070 = vunpack.c.l.s4 839922192
      %v1071 = vunpack.c.0.s8 %v1070
      %v1072 = vlaneseq
      %v1073 = vshrl.u32 %v1072, 7
      %v1074 = vsub.s32 %v1071, %v1073
      %v1075 = vrot.slane %v1067, %v1074
      %1077 = vset.pattern.permute.xlu0 0
      %1078 = vperm.xlu0 %1077, %v747
      %v1079 = vpop.permute.xlu0 %1078
      %v1082 = vunpack.c.l.s4 839922192
      %v1083 = vunpack.c.0.s8 %v1082
      %v1084 = vlaneseq
      %v1085 = vshrl.u32 %v1084, 7
      %v1086 = vsub.s32 %v1083, %v1085
      %v1087 = vrot.slane %v1079, %v1086
      %1089 = vset.pattern.permute.xlu0 0
      %1090 = vperm.xlu0 %1089, %v748
      %v1091 = vpop.permute.xlu0 %1090
      %v1094 = vunpack.c.l.s4 839922192
      %v1095 = vunpack.c.0.s8 %v1094
      %v1096 = vlaneseq
      %v1097 = vshrl.u32 %v1096, 7
      %v1098 = vsub.s32 %v1095, %v1097
      %v1099 = vrot.slane %v1091, %v1098
      %1101 = vset.pattern.permute.xlu0 0
      %1102 = vperm.xlu0 %1101, %v749
      %v1103 = vpop.permute.xlu0 %1102
      %v1106 = vunpack.c.l.s4 839922192
      %v1107 = vunpack.c.0.s8 %v1106
      %v1108 = vlaneseq
      %v1109 = vshrl.u32 %v1108, 7
      %v1110 = vsub.s32 %v1107, %v1109
      %v1111 = vrot.slane %v1103, %v1110
      %1113 = vset.pattern.permute.xlu0 0
      %1114 = vperm.xlu0 %1113, %v750
      %v1115 = vpop.permute.xlu0 %1114
      %v1118 = vunpack.c.l.s4 839922192
      %v1119 = vunpack.c.0.s8 %v1118
      %v1120 = vlaneseq
      %v1121 = vshrl.u32 %v1120, 7
      %v1122 = vsub.s32 %v1119, %v1121
      %v1123 = vrot.slane %v1115, %v1122
      %1125 = vset.pattern.permute.xlu0 0
      %1126 = vperm.xlu0 %1125, %v751
      %v1127 = vpop.permute.xlu0 %1126
      %v1130 = vunpack.c.l.s4 839922192
      %v1131 = vunpack.c.0.s8 %v1130
      %v1132 = vlaneseq
      %v1133 = vshrl.u32 %v1132, 7
      %v1134 = vsub.s32 %v1131, %v1133
      %v1135 = vrot.slane %v1127, %v1134
      %v1168 = vunpack.c.l.b16 %v763
      %v1169 = vunpack.c.l.b16 %v775
      %v1170 = vunpack.c.l.b16 %v787
      %v1171 = vunpack.c.l.b16 %v799
      %v1172 = vunpack.c.l.b16 %v811
      %v1173 = vunpack.c.l.b16 %v823
      %v1174 = vunpack.c.l.b16 %v835
      %v1175 = vunpack.c.l.b16 %v847
      %v1176 = vunpack.c.l.b16 %v859
      %v1177 = vunpack.c.l.b16 %v871
      %v1178 = vunpack.c.l.b16 %v883
      %v1179 = vunpack.c.l.b16 %v895
      %v1180 = vunpack.c.l.b16 %v907
      %v1181 = vunpack.c.l.b16 %v919
      %v1182 = vunpack.c.l.b16 %v931
      %v1183 = vunpack.c.l.b16 %v943
      %v1184 = vunpack.c.l.b16 %v955
      %v1185 = vunpack.c.l.b16 %v967
      %v1186 = vunpack.c.l.b16 %v979
      %v1187 = vunpack.c.l.b16 %v991
      %v1188 = vunpack.c.l.b16 %v1003
      %v1189 = vunpack.c.l.b16 %v1015
      %v1190 = vunpack.c.l.b16 %v1027
      %v1191 = vunpack.c.l.b16 %v1039
      %v1192 = vunpack.c.l.b16 %v1051
      %v1193 = vunpack.c.l.b16 %v1063
      %v1194 = vunpack.c.l.b16 %v1075
      %v1195 = vunpack.c.l.b16 %v1087
      %v1196 = vunpack.c.l.b16 %v1099
      %v1197 = vunpack.c.l.b16 %v1111
      %v1198 = vunpack.c.l.b16 %v1123
      %v1199 = vunpack.c.l.b16 %v1135
      %v1200 = vpack.c.b16 %v1169, %v1168
      %v1201 = vpack.c.b16 %v1171, %v1170
      %v1202 = vpack.c.b16 %v1173, %v1172
      %v1203 = vpack.c.b16 %v1175, %v1174
      %v1204 = vpack.c.b16 %v1177, %v1176
      %v1205 = vpack.c.b16 %v1179, %v1178
      %v1206 = vpack.c.b16 %v1181, %v1180
      %v1207 = vpack.c.b16 %v1183, %v1182
      %v1208 = vpack.c.b16 %v1185, %v1184
      %v1209 = vpack.c.b16 %v1187, %v1186
      %v1210 = vpack.c.b16 %v1189, %v1188
      %v1211 = vpack.c.b16 %v1191, %v1190
      %v1212 = vpack.c.b16 %v1193, %v1192
      %v1213 = vpack.c.b16 %v1195, %v1194
      %v1214 = vpack.c.b16 %v1197, %v1196
      %v1215 = vpack.c.b16 %v1199, %v1198
      %v1232 = vadd.bf16 %v688, %v1200
      %v1233 = vadd.bf16 %v689, %v1200
      %v1234 = vadd.bf16 %v690, %v1201
      %v1235 = vadd.bf16 %v691, %v1201
      %v1236 = vadd.bf16 %v692, %v1202
      %v1237 = vadd.bf16 %v693, %v1202
      %v1238 = vadd.bf16 %v694, %v1203
      %v1239 = vadd.bf16 %v695, %v1203
      %v1240 = vadd.bf16 %v696, %v1204
      %v1241 = vadd.bf16 %v697, %v1204
      %v1242 = vadd.bf16 %v698, %v1205
      %v1243 = vadd.bf16 %v699, %v1205
      %v1244 = vadd.bf16 %v700, %v1206
      %v1245 = vadd.bf16 %v701, %v1206
      %v1246 = vadd.bf16 %v702, %v1207
      %v1247 = vadd.bf16 %v703, %v1207
      %v1248 = vadd.bf16 %v704, %v1208
      %v1249 = vadd.bf16 %v705, %v1208
      %v1250 = vadd.bf16 %v706, %v1209
      %v1251 = vadd.bf16 %v707, %v1209
      %v1252 = vadd.bf16 %v708, %v1210
      %v1253 = vadd.bf16 %v709, %v1210
      %v1254 = vadd.bf16 %v710, %v1211
      %v1255 = vadd.bf16 %v711, %v1211
      %v1256 = vadd.bf16 %v712, %v1212
      %v1257 = vadd.bf16 %v713, %v1212
      %v1258 = vadd.bf16 %v714, %v1213
      %v1259 = vadd.bf16 %v715, %v1213
      %v1260 = vadd.bf16 %v716, %v1214
      %v1261 = vadd.bf16 %v717, %v1214
      %v1262 = vadd.bf16 %v718, %v1215
      %v1263 = vadd.bf16 %v719, %v1215
      %v1264 = vmax.bf16 %v1232, 0
      %v1265 = vmax.bf16 %v1233, 0
      %v1266 = vmax.bf16 %v1234, 0
      %v1267 = vmax.bf16 %v1235, 0
      %v1268 = vmax.bf16 %v1236, 0
      %v1269 = vmax.bf16 %v1237, 0
      %v1270 = vmax.bf16 %v1238, 0
      %v1271 = vmax.bf16 %v1239, 0
      %v1272 = vmax.bf16 %v1240, 0
      %v1273 = vmax.bf16 %v1241, 0
      %v1274 = vmax.bf16 %v1242, 0
      %v1275 = vmax.bf16 %v1243, 0
      %v1276 = vmax.bf16 %v1244, 0
      %v1277 = vmax.bf16 %v1245, 0
      %v1278 = vmax.bf16 %v1246, 0
      %v1279 = vmax.bf16 %v1247, 0
      %v1280 = vmax.bf16 %v1248, 0
      %v1281 = vmax.bf16 %v1249, 0
      %v1282 = vmax.bf16 %v1250, 0
      %v1283 = vmax.bf16 %v1251, 0
      %v1284 = vmax.bf16 %v1252, 0
      %v1285 = vmax.bf16 %v1253, 0
      %v1286 = vmax.bf16 %v1254, 0
      %v1287 = vmax.bf16 %v1255, 0
      %v1288 = vmax.bf16 %v1256, 0
      %v1289 = vmax.bf16 %v1257, 0
      %v1290 = vmax.bf16 %v1258, 0
      %v1291 = vmax.bf16 %v1259, 0
      %v1292 = vmax.bf16 %v1260, 0
      %v1293 = vmax.bf16 %v1261, 0
      %v1294 = vmax.bf16 %v1262, 0
      %v1295 = vmax.bf16 %v1263, 0
      %v1296 = vld [vmem:[%s3] sm:$0xff]
      %v1297 = vld [vmem:[%s3 + $0x8] sm:$0xff]
      %v1298 = vld [vmem:[%s3 + $0x10] sm:$0xff]
      %v1299 = vld [vmem:[%s3 + $0x18] sm:$0xff]
      %v1300 = vld [vmem:[%s3 + $0x20] sm:$0xff]
      %v1301 = vld [vmem:[%s3 + $0x28] sm:$0xff]
      %v1302 = vld [vmem:[%s3 + $0x30] sm:$0xff]
      %v1303 = vld [vmem:[%s3 + $0x38] sm:$0xff]
      %v1304 = vld [vmem:[%s3 + $0x40] sm:$0xff]
      %v1305 = vld [vmem:[%s3 + $0x48] sm:$0xff]
      %v1306 = vld [vmem:[%s3 + $0x50] sm:$0xff]
      %v1307 = vld [vmem:[%s3 + $0x58] sm:$0xff]
      %v1308 = vld [vmem:[%s3 + $0x60] sm:$0xff]
      %v1309 = vld [vmem:[%s3 + $0x68] sm:$0xff]
      %v1310 = vld [vmem:[%s3 + $0x70] sm:$0xff]
      %v1311 = vld [vmem:[%s3 + $0x78] sm:$0xff]
      %v1312 = vld [vmem:[%s3 + $0x80] sm:$0xff]
      %v1313 = vld [vmem:[%s3 + $0x88] sm:$0xff]
      %v1314 = vld [vmem:[%s3 + $0x90] sm:$0xff]
      %v1315 = vld [vmem:[%s3 + $0x98] sm:$0xff]
      %v1316 = vld [vmem:[%s3 + $0xa0] sm:$0xff]
      %v1317 = vld [vmem:[%s3 + $0xa8] sm:$0xff]
      %v1318 = vld [vmem:[%s3 + $0xb0] sm:$0xff]
      %v1319 = vld [vmem:[%s3 + $0xb8] sm:$0xff]
      %v1320 = vld [vmem:[%s3 + $0xc0] sm:$0xff]
      %v1321 = vld [vmem:[%s3 + $0xc8] sm:$0xff]
      %v1322 = vld [vmem:[%s3 + $0xd0] sm:$0xff]
      %v1323 = vld [vmem:[%s3 + $0xd8] sm:$0xff]
      %v1324 = vld [vmem:[%s3 + $0xe0] sm:$0xff]
      %v1325 = vld [vmem:[%s3 + $0xe8] sm:$0xff]
      %v1326 = vld [vmem:[%s3 + $0xf0] sm:$0xff]
      %v1327 = vld [vmem:[%s3 + $0xf8] sm:$0xff]
      %v1360 = vunpack.c.l.b16 %v1296
      %v1361 = vunpack.c.h.b16 %v1296
      %v1362 = vunpack.c.l.b16 %v1297
      %v1363 = vunpack.c.h.b16 %v1297
      %v1364 = vunpack.c.l.b16 %v1298
      %v1365 = vunpack.c.h.b16 %v1298
      %v1366 = vunpack.c.l.b16 %v1299
      %v1367 = vunpack.c.h.b16 %v1299
      %v1368 = vunpack.c.l.b16 %v1300
      %v1369 = vunpack.c.h.b16 %v1300
      %v1370 = vunpack.c.l.b16 %v1301
      %v1371 = vunpack.c.h.b16 %v1301
      %v1372 = vunpack.c.l.b16 %v1302
      %v1373 = vunpack.c.h.b16 %v1302
      %v1374 = vunpack.c.l.b16 %v1303
      %v1375 = vunpack.c.h.b16 %v1303
      %v1376 = vunpack.c.l.b16 %v1304
      %v1377 = vunpack.c.h.b16 %v1304
      %v1378 = vunpack.c.l.b16 %v1305
      %v1379 = vunpack.c.h.b16 %v1305
      %v1380 = vunpack.c.l.b16 %v1306
      %v1381 = vunpack.c.h.b16 %v1306
      %v1382 = vunpack.c.l.b16 %v1307
      %v1383 = vunpack.c.h.b16 %v1307
      %v1384 = vunpack.c.l.b16 %v1308
      %v1385 = vunpack.c.h.b16 %v1308
      %v1386 = vunpack.c.l.b16 %v1309
      %v1387 = vunpack.c.h.b16 %v1309
      %v1388 = vunpack.c.l.b16 %v1310
      %v1389 = vunpack.c.h.b16 %v1310
      %v1390 = vunpack.c.l.b16 %v1311
      %v1391 = vunpack.c.h.b16 %v1311
      %v1392 = vunpack.c.l.b16 %v1312
      %v1393 = vunpack.c.h.b16 %v1312
      %v1394 = vunpack.c.l.b16 %v1313
      %v1395 = vunpack.c.h.b16 %v1313
      %v1396 = vunpack.c.l.b16 %v1314
      %v1397 = vunpack.c.h.b16 %v1314
      %v1398 = vunpack.c.l.b16 %v1315
      %v1399 = vunpack.c.h.b16 %v1315
      %v1400 = vunpack.c.l.b16 %v1316
      %v1401 = vunpack.c.h.b16 %v1316
      %v1402 = vunpack.c.l.b16 %v1317
      %v1403 = vunpack.c.h.b16 %v1317
      %v1404 = vunpack.c.l.b16 %v1318
      %v1405 = vunpack.c.h.b16 %v1318
      %v1406 = vunpack.c.l.b16 %v1319
      %v1407 = vunpack.c.h.b16 %v1319
      %v1408 = vunpack.c.l.b16 %v1320
      %v1409 = vunpack.c.h.b16 %v1320
      %v1410 = vunpack.c.l.b16 %v1321
      %v1411 = vunpack.c.h.b16 %v1321
      %v1412 = vunpack.c.l.b16 %v1322
      %v1413 = vunpack.c.h.b16 %v1322
      %v1414 = vunpack.c.l.b16 %v1323
      %v1415 = vunpack.c.h.b16 %v1323
      %v1416 = vunpack.c.l.b16 %v1324
      %v1417 = vunpack.c.h.b16 %v1324
      %v1418 = vunpack.c.l.b16 %v1325
      %v1419 = vunpack.c.h.b16 %v1325
      %v1420 = vunpack.c.l.b16 %v1326
      %v1421 = vunpack.c.h.b16 %v1326
      %v1422 = vunpack.c.l.b16 %v1327
      %v1423 = vunpack.c.h.b16 %v1327
      %v1424 = vpack.c.b16 %v1362, %v1360
      %v1425 = vpack.c.b16 %v1363, %v1361
      %v1426 = vpack.c.b16 %v1366, %v1364
      %v1427 = vpack.c.b16 %v1367, %v1365
      %v1428 = vpack.c.b16 %v1370, %v1368
      %v1429 = vpack.c.b16 %v1371, %v1369
      %v1430 = vpack.c.b16 %v1374, %v1372
      %v1431 = vpack.c.b16 %v1375, %v1373
      %v1432 = vpack.c.b16 %v1378, %v1376
      %v1433 = vpack.c.b16 %v1379, %v1377
      %v1434 = vpack.c.b16 %v1382, %v1380
      %v1435 = vpack.c.b16 %v1383, %v1381
      %v1436 = vpack.c.b16 %v1386, %v1384
      %v1437 = vpack.c.b16 %v1387, %v1385
      %v1438 = vpack.c.b16 %v1390, %v1388
      %v1439 = vpack.c.b16 %v1391, %v1389
      %v1440 = vpack.c.b16 %v1394, %v1392
      %v1441 = vpack.c.b16 %v1395, %v1393
      %v1442 = vpack.c.b16 %v1398, %v1396
      %v1443 = vpack.c.b16 %v1399, %v1397
      %v1444 = vpack.c.b16 %v1402, %v1400
      %v1445 = vpack.c.b16 %v1403, %v1401
      %v1446 = vpack.c.b16 %v1406, %v1404
      %v1447 = vpack.c.b16 %v1407, %v1405
      %v1448 = vpack.c.b16 %v1410, %v1408
      %v1449 = vpack.c.b16 %v1411, %v1409
      %v1450 = vpack.c.b16 %v1414, %v1412
      %v1451 = vpack.c.b16 %v1415, %v1413
      %v1452 = vpack.c.b16 %v1418, %v1416
      %v1453 = vpack.c.b16 %v1419, %v1417
      %v1454 = vpack.c.b16 %v1422, %v1420
      %v1455 = vpack.c.b16 %v1423, %v1421
      %1488 = vmatprep.subr.bf16.mxu0 %v1265
      %1489 = vmatpush1.bf16.msra.mxu0 %v1264
      %1490 = vmatprep.subr.bf16.mxu0 %v1267
      %1491 = vmatpush1.bf16.msra.mxu0 %v1266
      %1492 = vmatprep.subr.bf16.mxu0 %v1269
      %1493 = vmatpush1.bf16.msra.mxu0 %v1268
      %1494 = vmatprep.subr.bf16.mxu0 %v1271
      %1495 = vmatpush1.bf16.msra.mxu0 %v1270
      %1496 = vmatprep.subr.bf16.mxu0 %v1273
      %1497 = vmatpush1.bf16.msra.mxu0 %v1272
      %1498 = vmatprep.subr.bf16.mxu0 %v1275
      %1499 = vmatpush1.bf16.msra.mxu0 %v1274
      %1500 = vmatprep.subr.bf16.mxu0 %v1277
      %1501 = vmatpush1.bf16.msra.mxu0 %v1276
      %1502 = vmatprep.subr.bf16.mxu0 %v1279
      %1503 = vmatpush1.bf16.msra.mxu0 %v1278
      %1504 = vmatprep.subr.bf16.mxu0 %v1281
      %1505 = vmatpush1.bf16.msra.mxu0 %v1280
      %1506 = vmatprep.subr.bf16.mxu0 %v1283
      %1507 = vmatpush1.bf16.msra.mxu0 %v1282
      %1508 = vmatprep.subr.bf16.mxu0 %v1285
      %1509 = vmatpush1.bf16.msra.mxu0 %v1284
      %1510 = vmatprep.subr.bf16.mxu0 %v1287
      %1511 = vmatpush1.bf16.msra.mxu0 %v1286
      %1512 = vmatprep.subr.bf16.mxu0 %v1289
      %1513 = vmatpush1.bf16.msra.mxu0 %v1288
      %1514 = vmatprep.subr.bf16.mxu0 %v1291
      %1515 = vmatpush1.bf16.msra.mxu0 %v1290
      %1516 = vmatprep.subr.bf16.mxu0 %v1293
      %1517 = vmatpush1.bf16.msra.mxu0 %v1292
      %1518 = vmatprep.subr.bf16.mxu0 %v1295
      %1519 = vmatpush1.bf16.msra.mxu0 %v1294
      %1520 = vmatprep.mubr.bf16.mxu0 %v1425
      %1521 = vmatmul.mubr.bf16.gmra.mrb[0].mxu0 %v1424
      %v1522 = vpop.f32.mrb[0].mxu0
      %v1523 = vadd.f32 0.0, %v1522
      %v1524 = vpop.f32.mrb[0].mxu0
      %v1525 = vadd.f32 0.0, %v1524
      %v1526 = vpop.f32.mrb[0].mxu0
      %v1527 = vadd.f32 0.0, %v1526
      %v1528 = vpop.f32.mrb[0].mxu0
      %v1529 = vadd.f32 0.0, %v1528
      %1530 = vmatprep.mubr.bf16.mxu0 %v1427
      %1531 = vmatmul.mubr.bf16.gmra.mrb[0].mxu0 %v1426
      %v1532 = vpop.f32.mrb[0].mxu0
      %v1533 = vadd.f32 0.0, %v1532
      %v1534 = vpop.f32.mrb[0].mxu0
      %v1535 = vadd.f32 0.0, %v1534
      %v1536 = vpop.f32.mrb[0].mxu0
      %v1537 = vadd.f32 0.0, %v1536
      %v1538 = vpop.f32.mrb[0].mxu0
      %v1539 = vadd.f32 0.0, %v1538
      %1540 = vmatprep.mubr.bf16.mxu0 %v1429
      %1541 = vmatmul.mubr.bf16.gmra.mrb[0].mxu0 %v1428
      %v1542 = vpop.f32.mrb[0].mxu0
      %v1543 = vadd.f32 0.0, %v1542
      %v1544 = vpop.f32.mrb[0].mxu0
      %v1545 = vadd.f32 0.0, %v1544
      %v1546 = vpop.f32.mrb[0].mxu0
      %v1547 = vadd.f32 0.0, %v1546
      %v1548 = vpop.f32.mrb[0].mxu0
      %v1549 = vadd.f32 0.0, %v1548
      %1550 = vmatprep.mubr.bf16.mxu0 %v1431
      %1551 = vmatmul.mubr.bf16.gmra.mrb[0].mxu0 %v1430
      %v1552 = vpop.f32.mrb[0].mxu0
      %v1553 = vadd.f32 0.0, %v1552
      %v1554 = vpop.f32.mrb[0].mxu0
      %v1555 = vadd.f32 0.0, %v1554
      %v1556 = vpop.f32.mrb[0].mxu0
      %v1557 = vadd.f32 0.0, %v1556
      %v1558 = vpop.f32.mrb[0].mxu0
      %v1559 = vadd.f32 0.0, %v1558
      %1560 = vmatprep.mubr.bf16.mxu0 %v1433
      %1561 = vmatmul.mubr.bf16.gmra.mrb[0].mxu0 %v1432
      %v1562 = vpop.f32.mrb[0].mxu0
      %v1563 = vadd.f32 0.0, %v1562
      %v1564 = vpop.f32.mrb[0].mxu0
      %v1565 = vadd.f32 0.0, %v1564
      %v1566 = vpop.f32.mrb[0].mxu0
      %v1567 = vadd.f32 0.0, %v1566
      %v1568 = vpop.f32.mrb[0].mxu0
      %v1569 = vadd.f32 0.0, %v1568
      %1570 = vmatprep.mubr.bf16.mxu0 %v1435
      %1571 = vmatmul.mubr.bf16.gmra.mrb[0].mxu0 %v1434
      %v1572 = vpop.f32.mrb[0].mxu0
      %v1573 = vadd.f32 0.0, %v1572
      %v1574 = vpop.f32.mrb[0].mxu0
      %v1575 = vadd.f32 0.0, %v1574
      %v1576 = vpop.f32.mrb[0].mxu0
      %v1577 = vadd.f32 0.0, %v1576
      %v1578 = vpop.f32.mrb[0].mxu0
      %v1579 = vadd.f32 0.0, %v1578
      %1580 = vmatprep.mubr.bf16.mxu0 %v1437
      %1581 = vmatmul.mubr.bf16.gmra.mrb[0].mxu0 %v1436
      %v1582 = vpop.f32.mrb[0].mxu0
      %v1583 = vadd.f32 0.0, %v1582
      %v1584 = vpop.f32.mrb[0].mxu0
      %v1585 = vadd.f32 0.0, %v1584
      %v1586 = vpop.f32.mrb[0].mxu0
      %v1587 = vadd.f32 0.0, %v1586
      %v1588 = vpop.f32.mrb[0].mxu0
      %v1589 = vadd.f32 0.0, %v1588
      %1590 = vmatprep.mubr.bf16.mxu0 %v1439
      %1591 = vmatmul.mubr.bf16.gmra.mrb[0].mxu0 %v1438
      %v1592 = vpop.f32.mrb[0].mxu0
      %v1593 = vadd.f32 0.0, %v1592
      %v1594 = vpop.f32.mrb[0].mxu0
      %v1595 = vadd.f32 0.0, %v1594
      %v1596 = vpop.f32.mrb[0].mxu0
      %v1597 = vadd.f32 0.0, %v1596
      %v1598 = vpop.f32.mrb[0].mxu0
      %v1599 = vadd.f32 0.0, %v1598
      %1600 = vmatprep.mubr.bf16.mxu0 %v1441
      %1601 = vmatmul.mubr.bf16.gmra.mrb[0].mxu0 %v1440
      %v1602 = vpop.f32.mrb[0].mxu0
      %v1603 = vadd.f32 0.0, %v1602
      %v1604 = vpop.f32.mrb[0].mxu0
      %v1605 = vadd.f32 0.0, %v1604
      %v1606 = vpop.f32.mrb[0].mxu0
      %v1607 = vadd.f32 0.0, %v1606
      %v1608 = vpop.f32.mrb[0].mxu0
      %v1609 = vadd.f32 0.0, %v1608
      %1610 = vmatprep.mubr.bf16.mxu0 %v1443
      %1611 = vmatmul.mubr.bf16.gmra.mrb[0].mxu0 %v1442
      %v1612 = vpop.f32.mrb[0].mxu0
      %v1613 = vadd.f32 0.0, %v1612
      %v1614 = vpop.f32.mrb[0].mxu0
      %v1615 = vadd.f32 0.0, %v1614
      %v1616 = vpop.f32.mrb[0].mxu0
      %v1617 = vadd.f32 0.0, %v1616
      %v1618 = vpop.f32.mrb[0].mxu0
      %v1619 = vadd.f32 0.0, %v1618
      %1620 = vmatprep.mubr.bf16.mxu0 %v1445
      %1621 = vmatmul.mubr.bf16.gmra.mrb[0].mxu0 %v1444
      %v1622 = vpop.f32.mrb[0].mxu0
      %v1623 = vadd.f32 0.0, %v1622
      %v1624 = vpop.f32.mrb[0].mxu0
      %v1625 = vadd.f32 0.0, %v1624
      %v1626 = vpop.f32.mrb[0].mxu0
      %v1627 = vadd.f32 0.0, %v1626
      %v1628 = vpop.f32.mrb[0].mxu0
      %v1629 = vadd.f32 0.0, %v1628
      %1630 = vmatprep.mubr.bf16.mxu0 %v1447
      %1631 = vmatmul.mubr.bf16.gmra.mrb[0].mxu0 %v1446
      %v1632 = vpop.f32.mrb[0].mxu0
      %v1633 = vadd.f32 0.0, %v1632
      %v1634 = vpop.f32.mrb[0].mxu0
      %v1635 = vadd.f32 0.0, %v1634
      %v1636 = vpop.f32.mrb[0].mxu0
      %v1637 = vadd.f32 0.0, %v1636
      %v1638 = vpop.f32.mrb[0].mxu0
      %v1639 = vadd.f32 0.0, %v1638
      %1640 = vmatprep.mubr.bf16.mxu0 %v1449
      %1641 = vmatmul.mubr.bf16.gmra.mrb[0].mxu0 %v1448
      %v1642 = vpop.f32.mrb[0].mxu0
      %v1643 = vadd.f32 0.0, %v1642
      %v1644 = vpop.f32.mrb[0].mxu0
      %v1645 = vadd.f32 0.0, %v1644
      %v1646 = vpop.f32.mrb[0].mxu0
      %v1647 = vadd.f32 0.0, %v1646
      %v1648 = vpop.f32.mrb[0].mxu0
      %v1649 = vadd.f32 0.0, %v1648
      %1650 = vmatprep.mubr.bf16.mxu0 %v1451
      %1651 = vmatmul.mubr.bf16.gmra.mrb[0].mxu0 %v1450
      %v1652 = vpop.f32.mrb[0].mxu0
      %v1653 = vadd.f32 0.0, %v1652
      %v1654 = vpop.f32.mrb[0].mxu0
      %v1655 = vadd.f32 0.0, %v1654
      %v1656 = vpop.f32.mrb[0].mxu0
      %v1657 = vadd.f32 0.0, %v1656
      %v1658 = vpop.f32.mrb[0].mxu0
      %v1659 = vadd.f32 0.0, %v1658
      %1660 = vmatprep.mubr.bf16.mxu0 %v1453
      %1661 = vmatmul.mubr.bf16.gmra.mrb[0].mxu0 %v1452
      %v1662 = vpop.f32.mrb[0].mxu0
      %v1663 = vadd.f32 0.0, %v1662
      %v1664 = vpop.f32.mrb[0].mxu0
      %v1665 = vadd.f32 0.0, %v1664
      %v1666 = vpop.f32.mrb[0].mxu0
      %v1667 = vadd.f32 0.0, %v1666
      %v1668 = vpop.f32.mrb[0].mxu0
      %v1669 = vadd.f32 0.0, %v1668
      %1670 = vmatprep.mubr.bf16.mxu0 %v1455
      %1671 = vmatmul.mubr.bf16.gmra.mrb[0].mxu0 %v1454
      %v1672 = vpop.f32.mrb[0].mxu0
      %v1673 = vadd.f32 0.0, %v1672
      %v1674 = vpop.f32.mrb[0].mxu0
      %v1675 = vadd.f32 0.0, %v1674
      %v1676 = vpop.f32.mrb[0].mxu0
      %v1677 = vadd.f32 0.0, %v1676
      %v1678 = vpop.f32.mrb[0].mxu0
      %v1679 = vadd.f32 0.0, %v1678
      %1680 = vdwg.mxu0
      %v1681 = vpack.c.bf16 %v1527, %v1523
      %v1682 = vpack.c.bf16 %v1529, %v1525
      %v1683 = vpack.c.bf16 %v1537, %v1533
      %v1684 = vpack.c.bf16 %v1539, %v1535
      %v1685 = vpack.c.bf16 %v1547, %v1543
      %v1686 = vpack.c.bf16 %v1549, %v1545
      %v1687 = vpack.c.bf16 %v1557, %v1553
      %v1688 = vpack.c.bf16 %v1559, %v1555
      %v1689 = vpack.c.bf16 %v1567, %v1563
      %v1690 = vpack.c.bf16 %v1569, %v1565
      %v1691 = vpack.c.bf16 %v1577, %v1573
      %v1692 = vpack.c.bf16 %v1579, %v1575
      %v1693 = vpack.c.bf16 %v1587, %v1583
      %v1694 = vpack.c.bf16 %v1589, %v1585
      %v1695 = vpack.c.bf16 %v1597, %v1593
      %v1696 = vpack.c.bf16 %v1599, %v1595
      %v1697 = vpack.c.bf16 %v1607, %v1603
      %v1698 = vpack.c.bf16 %v1609, %v1605
      %v1699 = vpack.c.bf16 %v1617, %v1613
      %v1700 = vpack.c.bf16 %v1619, %v1615
      %v1701 = vpack.c.bf16 %v1627, %v1623
      %v1702 = vpack.c.bf16 %v1629, %v1625
      %v1703 = vpack.c.bf16 %v1637, %v1633
      %v1704 = vpack.c.bf16 %v1639, %v1635
      %v1705 = vpack.c.bf16 %v1647, %v1643
      %v1706 = vpack.c.bf16 %v1649, %v1645
      %v1707 = vpack.c.bf16 %v1657, %v1653
      %v1708 = vpack.c.bf16 %v1659, %v1655
      %v1709 = vpack.c.bf16 %v1667, %v1663
      %v1710 = vpack.c.bf16 %v1669, %v1665
      %v1711 = vpack.c.bf16 %v1677, %v1673
      %v1712 = vpack.c.bf16 %v1679, %v1675
      %v1713 = vld [vmem:[%s4] sm:$0xf]
      %v1714 = vld [vmem:[%s4 + $0x4] sm:$0xf]
      %v1715 = vld [vmem:[%s4 + $0x8] sm:$0xf]
      %v1716 = vld [vmem:[%s4 + $0xc] sm:$0xf]
      %v1717 = vld [vmem:[%s4 + $0x10] sm:$0xf]
      %v1718 = vld [vmem:[%s4 + $0x14] sm:$0xf]
      %v1719 = vld [vmem:[%s4 + $0x18] sm:$0xf]
      %v1720 = vld [vmem:[%s4 + $0x1c] sm:$0xf]
      %v1721 = vld [vmem:[%s4 + $0x20] sm:$0xf]
      %v1722 = vld [vmem:[%s4 + $0x24] sm:$0xf]
      %v1723 = vld [vmem:[%s4 + $0x28] sm:$0xf]
      %v1724 = vld [vmem:[%s4 + $0x2c] sm:$0xf]
      %v1725 = vld [vmem:[%s4 + $0x30] sm:$0xf]
      %v1726 = vld [vmem:[%s4 + $0x34] sm:$0xf]
      %v1727 = vld [vmem:[%s4 + $0x38] sm:$0xf]
      %v1728 = vld [vmem:[%s4 + $0x3c] sm:$0xf]
      %v1729 = vld [vmem:[%s4 + $0x40] sm:$0xf]
      %v1730 = vld [vmem:[%s4 + $0x44] sm:$0xf]
      %v1731 = vld [vmem:[%s4 + $0x48] sm:$0xf]
      %v1732 = vld [vmem:[%s4 + $0x4c] sm:$0xf]
      %v1733 = vld [vmem:[%s4 + $0x50] sm:$0xf]
      %v1734 = vld [vmem:[%s4 + $0x54] sm:$0xf]
      %v1735 = vld [vmem:[%s4 + $0x58] sm:$0xf]
      %v1736 = vld [vmem:[%s4 + $0x5c] sm:$0xf]
      %v1737 = vld [vmem:[%s4 + $0x60] sm:$0xf]
      %v1738 = vld [vmem:[%s4 + $0x64] sm:$0xf]
      %v1739 = vld [vmem:[%s4 + $0x68] sm:$0xf]
      %v1740 = vld [vmem:[%s4 + $0x6c] sm:$0xf]
      %v1741 = vld [vmem:[%s4 + $0x70] sm:$0xf]
      %v1742 = vld [vmem:[%s4 + $0x74] sm:$0xf]
      %v1743 = vld [vmem:[%s4 + $0x78] sm:$0xf]
      %v1744 = vld [vmem:[%s4 + $0x7c] sm:$0xf]
      %1746 = vset.pattern.permute.xlu0 0
      %1747 = vperm.xlu0 %1746, %v1713
      %v1748 = vpop.permute.xlu0 %1747
      %v1751 = vunpack.c.l.s4 839922192
      %v1752 = vunpack.c.0.s8 %v1751
      %v1753 = vlaneseq
      %v1754 = vshrl.u32 %v1753, 7
      %v1755 = vsub.s32 %v1752, %v1754
      %v1756 = vrot.slane %v1748, %v1755
      %1758 = vset.pattern.permute.xlu0 0
      %1759 = vperm.xlu0 %1758, %v1714
      %v1760 = vpop.permute.xlu0 %1759
      %v1763 = vunpack.c.l.s4 839922192
      %v1764 = vunpack.c.0.s8 %v1763
      %v1765 = vlaneseq
      %v1766 = vshrl.u32 %v1765, 7
      %v1767 = vsub.s32 %v1764, %v1766
      %v1768 = vrot.slane %v1760, %v1767
      %1770 = vset.pattern.permute.xlu0 0
      %1771 = vperm.xlu0 %1770, %v1715
      %v1772 = vpop.permute.xlu0 %1771
      %v1775 = vunpack.c.l.s4 839922192
      %v1776 = vunpack.c.0.s8 %v1775
      %v1777 = vlaneseq
      %v1778 = vshrl.u32 %v1777, 7
      %v1779 = vsub.s32 %v1776, %v1778
      %v1780 = vrot.slane %v1772, %v1779
      %1782 = vset.pattern.permute.xlu0 0
      %1783 = vperm.xlu0 %1782, %v1716
      %v1784 = vpop.permute.xlu0 %1783
      %v1787 = vunpack.c.l.s4 839922192
      %v1788 = vunpack.c.0.s8 %v1787
      %v1789 = vlaneseq
      %v1790 = vshrl.u32 %v1789, 7
      %v1791 = vsub.s32 %v1788, %v1790
      %v1792 = vrot.slane %v1784, %v1791
      %1794 = vset.pattern.permute.xlu0 0
      %1795 = vperm.xlu0 %1794, %v1717
      %v1796 = vpop.permute.xlu0 %1795
      %v1799 = vunpack.c.l.s4 839922192
      %v1800 = vunpack.c.0.s8 %v1799
      %v1801 = vlaneseq
      %v1802 = vshrl.u32 %v1801, 7
      %v1803 = vsub.s32 %v1800, %v1802
      %v1804 = vrot.slane %v1796, %v1803
      %1806 = vset.pattern.permute.xlu0 0
      %1807 = vperm.xlu0 %1806, %v1718
      %v1808 = vpop.permute.xlu0 %1807
      %v1811 = vunpack.c.l.s4 839922192
      %v1812 = vunpack.c.0.s8 %v1811
      %v1813 = vlaneseq
      %v1814 = vshrl.u32 %v1813, 7
      %v1815 = vsub.s32 %v1812, %v1814
      %v1816 = vrot.slane %v1808, %v1815
      %1818 = vset.pattern.permute.xlu0 0
      %1819 = vperm.xlu0 %1818, %v1719
      %v1820 = vpop.permute.xlu0 %1819
      %v1823 = vunpack.c.l.s4 839922192
      %v1824 = vunpack.c.0.s8 %v1823
      %v1825 = vlaneseq
      %v1826 = vshrl.u32 %v1825, 7
      %v1827 = vsub.s32 %v1824, %v1826
      %v1828 = vrot.slane %v1820, %v1827
      %1830 = vset.pattern.permute.xlu0 0
      %1831 = vperm.xlu0 %1830, %v1720
      %v1832 = vpop.permute.xlu0 %1831
      %v1835 = vunpack.c.l.s4 839922192
      %v1836 = vunpack.c.0.s8 %v1835
      %v1837 = vlaneseq
      %v1838 = vshrl.u32 %v1837, 7
      %v1839 = vsub.s32 %v1836, %v1838
      %v1840 = vrot.slane %v1832, %v1839
      %1842 = vset.pattern.permute.xlu0 0
      %1843 = vperm.xlu0 %1842, %v1721
      %v1844 = vpop.permute.xlu0 %1843
      %v1847 = vunpack.c.l.s4 839922192
      %v1848 = vunpack.c.0.s8 %v1847
      %v1849 = vlaneseq
      %v1850 = vshrl.u32 %v1849, 7
      %v1851 = vsub.s32 %v1848, %v1850
      %v1852 = vrot.slane %v1844, %v1851
      %1854 = vset.pattern.permute.xlu0 0
      %1855 = vperm.xlu0 %1854, %v1722
      %v1856 = vpop.permute.xlu0 %1855
      %v1859 = vunpack.c.l.s4 839922192
      %v1860 = vunpack.c.0.s8 %v1859
      %v1861 = vlaneseq
      %v1862 = vshrl.u32 %v1861, 7
      %v1863 = vsub.s32 %v1860, %v1862
      %v1864 = vrot.slane %v1856, %v1863
      %1866 = vset.pattern.permute.xlu0 0
      %1867 = vperm.xlu0 %1866, %v1723
      %v1868 = vpop.permute.xlu0 %1867
      %v1871 = vunpack.c.l.s4 839922192
      %v1872 = vunpack.c.0.s8 %v1871
      %v1873 = vlaneseq
      %v1874 = vshrl.u32 %v1873, 7
      %v1875 = vsub.s32 %v1872, %v1874
      %v1876 = vrot.slane %v1868, %v1875
      %1878 = vset.pattern.permute.xlu0 0
      %1879 = vperm.xlu0 %1878, %v1724
      %v1880 = vpop.permute.xlu0 %1879
      %v1883 = vunpack.c.l.s4 839922192
      %v1884 = vunpack.c.0.s8 %v1883
      %v1885 = vlaneseq
      %v1886 = vshrl.u32 %v1885, 7
      %v1887 = vsub.s32 %v1884, %v1886
      %v1888 = vrot.slane %v1880, %v1887
      %1890 = vset.pattern.permute.xlu0 0
      %1891 = vperm.xlu0 %1890, %v1725
      %v1892 = vpop.permute.xlu0 %1891
      %v1895 = vunpack.c.l.s4 839922192
      %v1896 = vunpack.c.0.s8 %v1895
      %v1897 = vlaneseq
      %v1898 = vshrl.u32 %v1897, 7
      %v1899 = vsub.s32 %v1896, %v1898
      %v1900 = vrot.slane %v1892, %v1899
      %1902 = vset.pattern.permute.xlu0 0
      %1903 = vperm.xlu0 %1902, %v1726
      %v1904 = vpop.permute.xlu0 %1903
      %v1907 = vunpack.c.l.s4 839922192
      %v1908 = vunpack.c.0.s8 %v1907
      %v1909 = vlaneseq
      %v1910 = vshrl.u32 %v1909, 7
      %v1911 = vsub.s32 %v1908, %v1910
      %v1912 = vrot.slane %v1904, %v1911
      %1914 = vset.pattern.permute.xlu0 0
      %1915 = vperm.xlu0 %1914, %v1727
      %v1916 = vpop.permute.xlu0 %1915
      %v1919 = vunpack.c.l.s4 839922192
      %v1920 = vunpack.c.0.s8 %v1919
      %v1921 = vlaneseq
      %v1922 = vshrl.u32 %v1921, 7
      %v1923 = vsub.s32 %v1920, %v1922
      %v1924 = vrot.slane %v1916, %v1923
      %1926 = vset.pattern.permute.xlu0 0
      %1927 = vperm.xlu0 %1926, %v1728
      %v1928 = vpop.permute.xlu0 %1927
      %v1931 = vunpack.c.l.s4 839922192
      %v1932 = vunpack.c.0.s8 %v1931
      %v1933 = vlaneseq
      %v1934 = vshrl.u32 %v1933, 7
      %v1935 = vsub.s32 %v1932, %v1934
      %v1936 = vrot.slane %v1928, %v1935
      %1938 = vset.pattern.permute.xlu0 0
      %1939 = vperm.xlu0 %1938, %v1729
      %v1940 = vpop.permute.xlu0 %1939
      %v1943 = vunpack.c.l.s4 839922192
      %v1944 = vunpack.c.0.s8 %v1943
      %v1945 = vlaneseq
      %v1946 = vshrl.u32 %v1945, 7
      %v1947 = vsub.s32 %v1944, %v1946
      %v1948 = vrot.slane %v1940, %v1947
      %1950 = vset.pattern.permute.xlu0 0
      %1951 = vperm.xlu0 %1950, %v1730
      %v1952 = vpop.permute.xlu0 %1951
      %v1955 = vunpack.c.l.s4 839922192
      %v1956 = vunpack.c.0.s8 %v1955
      %v1957 = vlaneseq
      %v1958 = vshrl.u32 %v1957, 7
      %v1959 = vsub.s32 %v1956, %v1958
      %v1960 = vrot.slane %v1952, %v1959
      %1962 = vset.pattern.permute.xlu0 0
      %1963 = vperm.xlu0 %1962, %v1731
      %v1964 = vpop.permute.xlu0 %1963
      %v1967 = vunpack.c.l.s4 839922192
      %v1968 = vunpack.c.0.s8 %v1967
      %v1969 = vlaneseq
      %v1970 = vshrl.u32 %v1969, 7
      %v1971 = vsub.s32 %v1968, %v1970
      %v1972 = vrot.slane %v1964, %v1971
      %1974 = vset.pattern.permute.xlu0 0
      %1975 = vperm.xlu0 %1974, %v1732
      %v1976 = vpop.permute.xlu0 %1975
      %v1979 = vunpack.c.l.s4 839922192
      %v1980 = vunpack.c.0.s8 %v1979
      %v1981 = vlaneseq
      %v1982 = vshrl.u32 %v1981, 7
      %v1983 = vsub.s32 %v1980, %v1982
      %v1984 = vrot.slane %v1976, %v1983
      %1986 = vset.pattern.permute.xlu0 0
      %1987 = vperm.xlu0 %1986, %v1733
      %v1988 = vpop.permute.xlu0 %1987
      %v1991 = vunpack.c.l.s4 839922192
      %v1992 = vunpack.c.0.s8 %v1991
      %v1993 = vlaneseq
      %v1994 = vshrl.u32 %v1993, 7
      %v1995 = vsub.s32 %v1992, %v1994
      %v1996 = vrot.slane %v1988, %v1995
      %1998 = vset.pattern.permute.xlu0 0
      %1999 = vperm.xlu0 %1998, %v1734
      %v2000 = vpop.permute.xlu0 %1999
      %v2003 = vunpack.c.l.s4 839922192
      %v2004 = vunpack.c.0.s8 %v2003
      %v2005 = vlaneseq
      %v2006 = vshrl.u32 %v2005, 7
      %v2007 = vsub.s32 %v2004, %v2006
      %v2008 = vrot.slane %v2000, %v2007
      %2010 = vset.pattern.permute.xlu0 0
      %2011 = vperm.xlu0 %2010, %v1735
      %v2012 = vpop.permute.xlu0 %2011
      %v2015 = vunpack.c.l.s4 839922192
      %v2016 = vunpack.c.0.s8 %v2015
      %v2017 = vlaneseq
      %v2018 = vshrl.u32 %v2017, 7
      %v2019 = vsub.s32 %v2016, %v2018
      %v2020 = vrot.slane %v2012, %v2019
      %2022 = vset.pattern.permute.xlu0 0
      %2023 = vperm.xlu0 %2022, %v1736
      %v2024 = vpop.permute.xlu0 %2023
      %v2027 = vunpack.c.l.s4 839922192
      %v2028 = vunpack.c.0.s8 %v2027
      %v2029 = vlaneseq
      %v2030 = vshrl.u32 %v2029, 7
      %v2031 = vsub.s32 %v2028, %v2030
      %v2032 = vrot.slane %v2024, %v2031
      %2034 = vset.pattern.permute.xlu0 0
      %2035 = vperm.xlu0 %2034, %v1737
      %v2036 = vpop.permute.xlu0 %2035
      %v2039 = vunpack.c.l.s4 839922192
      %v2040 = vunpack.c.0.s8 %v2039
      %v2041 = vlaneseq
      %v2042 = vshrl.u32 %v2041, 7
      %v2043 = vsub.s32 %v2040, %v2042
      %v2044 = vrot.slane %v2036, %v2043
      %2046 = vset.pattern.permute.xlu0 0
      %2047 = vperm.xlu0 %2046, %v1738
      %v2048 = vpop.permute.xlu0 %2047
      %v2051 = vunpack.c.l.s4 839922192
      %v2052 = vunpack.c.0.s8 %v2051
      %v2053 = vlaneseq
      %v2054 = vshrl.u32 %v2053, 7
      %v2055 = vsub.s32 %v2052, %v2054
      %v2056 = vrot.slane %v2048, %v2055
      %2058 = vset.pattern.permute.xlu0 0
      %2059 = vperm.xlu0 %2058, %v1739
      %v2060 = vpop.permute.xlu0 %2059
      %v2063 = vunpack.c.l.s4 839922192
      %v2064 = vunpack.c.0.s8 %v2063
      %v2065 = vlaneseq
      %v2066 = vshrl.u32 %v2065, 7
      %v2067 = vsub.s32 %v2064, %v2066
      %v2068 = vrot.slane %v2060, %v2067
      %2070 = vset.pattern.permute.xlu0 0
      %2071 = vperm.xlu0 %2070, %v1740
      %v2072 = vpop.permute.xlu0 %2071
      %v2075 = vunpack.c.l.s4 839922192
      %v2076 = vunpack.c.0.s8 %v2075
      %v2077 = vlaneseq
      %v2078 = vshrl.u32 %v2077, 7
      %v2079 = vsub.s32 %v2076, %v2078
      %v2080 = vrot.slane %v2072, %v2079
      %2082 = vset.pattern.permute.xlu0 0
      %2083 = vperm.xlu0 %2082, %v1741
      %v2084 = vpop.permute.xlu0 %2083
      %v2087 = vunpack.c.l.s4 839922192
      %v2088 = vunpack.c.0.s8 %v2087
      %v2089 = vlaneseq
      %v2090 = vshrl.u32 %v2089, 7
      %v2091 = vsub.s32 %v2088, %v2090
      %v2092 = vrot.slane %v2084, %v2091
      %2094 = vset.pattern.permute.xlu0 0
      %2095 = vperm.xlu0 %2094, %v1742
      %v2096 = vpop.permute.xlu0 %2095
      %v2099 = vunpack.c.l.s4 839922192
      %v2100 = vunpack.c.0.s8 %v2099
      %v2101 = vlaneseq
      %v2102 = vshrl.u32 %v2101, 7
      %v2103 = vsub.s32 %v2100, %v2102
      %v2104 = vrot.slane %v2096, %v2103
      %2106 = vset.pattern.permute.xlu0 0
      %2107 = vperm.xlu0 %2106, %v1743
      %v2108 = vpop.permute.xlu0 %2107
      %v2111 = vunpack.c.l.s4 839922192
      %v2112 = vunpack.c.0.s8 %v2111
      %v2113 = vlaneseq
      %v2114 = vshrl.u32 %v2113, 7
      %v2115 = vsub.s32 %v2112, %v2114
      %v2116 = vrot.slane %v2108, %v2115
      %2118 = vset.pattern.permute.xlu0 0
      %2119 = vperm.xlu0 %2118, %v1744
      %v2120 = vpop.permute.xlu0 %2119
      %v2123 = vunpack.c.l.s4 839922192
      %v2124 = vunpack.c.0.s8 %v2123
      %v2125 = vlaneseq
      %v2126 = vshrl.u32 %v2125, 7
      %v2127 = vsub.s32 %v2124, %v2126
      %v2128 = vrot.slane %v2120, %v2127
      %v2161 = vunpack.c.l.b16 %v1756
      %v2162 = vunpack.c.l.b16 %v1768
      %v2163 = vunpack.c.l.b16 %v1780
      %v2164 = vunpack.c.l.b16 %v1792
      %v2165 = vunpack.c.l.b16 %v1804
      %v2166 = vunpack.c.l.b16 %v1816
      %v2167 = vunpack.c.l.b16 %v1828
      %v2168 = vunpack.c.l.b16 %v1840
      %v2169 = vunpack.c.l.b16 %v1852
      %v2170 = vunpack.c.l.b16 %v1864
      %v2171 = vunpack.c.l.b16 %v1876
      %v2172 = vunpack.c.l.b16 %v1888
      %v2173 = vunpack.c.l.b16 %v1900
      %v2174 = vunpack.c.l.b16 %v1912
      %v2175 = vunpack.c.l.b16 %v1924
      %v2176 = vunpack.c.l.b16 %v1936
      %v2177 = vunpack.c.l.b16 %v1948
      %v2178 = vunpack.c.l.b16 %v1960
      %v2179 = vunpack.c.l.b16 %v1972
      %v2180 = vunpack.c.l.b16 %v1984
      %v2181 = vunpack.c.l.b16 %v1996
      %v2182 = vunpack.c.l.b16 %v2008
      %v2183 = vunpack.c.l.b16 %v2020
      %v2184 = vunpack.c.l.b16 %v2032
      %v2185 = vunpack.c.l.b16 %v2044
      %v2186 = vunpack.c.l.b16 %v2056
      %v2187 = vunpack.c.l.b16 %v2068
      %v2188 = vunpack.c.l.b16 %v2080
      %v2189 = vunpack.c.l.b16 %v2092
      %v2190 = vunpack.c.l.b16 %v2104
      %v2191 = vunpack.c.l.b16 %v2116
      %v2192 = vunpack.c.l.b16 %v2128
      %v2193 = vpack.c.b16 %v2162, %v2161
      %v2194 = vpack.c.b16 %v2164, %v2163
      %v2195 = vpack.c.b16 %v2166, %v2165
      %v2196 = vpack.c.b16 %v2168, %v2167
      %v2197 = vpack.c.b16 %v2170, %v2169
      %v2198 = vpack.c.b16 %v2172, %v2171
      %v2199 = vpack.c.b16 %v2174, %v2173
      %v2200 = vpack.c.b16 %v2176, %v2175
      %v2201 = vpack.c.b16 %v2178, %v2177
      %v2202 = vpack.c.b16 %v2180, %v2179
      %v2203 = vpack.c.b16 %v2182, %v2181
      %v2204 = vpack.c.b16 %v2184, %v2183
      %v2205 = vpack.c.b16 %v2186, %v2185
      %v2206 = vpack.c.b16 %v2188, %v2187
      %v2207 = vpack.c.b16 %v2190, %v2189
      %v2208 = vpack.c.b16 %v2192, %v2191
      %v2225 = vadd.bf16 %v1681, %v2193
      %v2226 = vadd.bf16 %v1682, %v2193
      %v2227 = vadd.bf16 %v1683, %v2194
      %v2228 = vadd.bf16 %v1684, %v2194
      %v2229 = vadd.bf16 %v1685, %v2195
      %v2230 = vadd.bf16 %v1686, %v2195
      %v2231 = vadd.bf16 %v1687, %v2196
      %v2232 = vadd.bf16 %v1688, %v2196
      %v2233 = vadd.bf16 %v1689, %v2197
      %v2234 = vadd.bf16 %v1690, %v2197
      %v2235 = vadd.bf16 %v1691, %v2198
      %v2236 = vadd.bf16 %v1692, %v2198
      %v2237 = vadd.bf16 %v1693, %v2199
      %v2238 = vadd.bf16 %v1694, %v2199
      %v2239 = vadd.bf16 %v1695, %v2200
      %v2240 = vadd.bf16 %v1696, %v2200
      %v2241 = vadd.bf16 %v1697, %v2201
      %v2242 = vadd.bf16 %v1698, %v2201
      %v2243 = vadd.bf16 %v1699, %v2202
      %v2244 = vadd.bf16 %v1700, %v2202
      %v2245 = vadd.bf16 %v1701, %v2203
      %v2246 = vadd.bf16 %v1702, %v2203
      %v2247 = vadd.bf16 %v1703, %v2204
      %v2248 = vadd.bf16 %v1704, %v2204
      %v2249 = vadd.bf16 %v1705, %v2205
      %v2250 = vadd.bf16 %v1706, %v2205
      %v2251 = vadd.bf16 %v1707, %v2206
      %v2252 = vadd.bf16 %v1708, %v2206
      %v2253 = vadd.bf16 %v1709, %v2207
      %v2254 = vadd.bf16 %v1710, %v2207
      %v2255 = vadd.bf16 %v1711, %v2208
      %v2256 = vadd.bf16 %v1712, %v2208
      %v2257 = vmax.bf16 %v2225, 0
      %v2258 = vmax.bf16 %v2226, 0
      %v2259 = vmax.bf16 %v2227, 0
      %v2260 = vmax.bf16 %v2228, 0
      %v2261 = vmax.bf16 %v2229, 0
      %v2262 = vmax.bf16 %v2230, 0
      %v2263 = vmax.bf16 %v2231, 0
      %v2264 = vmax.bf16 %v2232, 0
      %v2265 = vmax.bf16 %v2233, 0
      %v2266 = vmax.bf16 %v2234, 0
      %v2267 = vmax.bf16 %v2235, 0
      %v2268 = vmax.bf16 %v2236, 0
      %v2269 = vmax.bf16 %v2237, 0
      %v2270 = vmax.bf16 %v2238, 0
      %v2271 = vmax.bf16 %v2239, 0
      %v2272 = vmax.bf16 %v2240, 0
      %v2273 = vmax.bf16 %v2241, 0
      %v2274 = vmax.bf16 %v2242, 0
      %v2275 = vmax.bf16 %v2243, 0
      %v2276 = vmax.bf16 %v2244, 0
      %v2277 = vmax.bf16 %v2245, 0
      %v2278 = vmax.bf16 %v2246, 0
      %v2279 = vmax.bf16 %v2247, 0
      %v2280 = vmax.bf16 %v2248, 0
      %v2281 = vmax.bf16 %v2249, 0
      %v2282 = vmax.bf16 %v2250, 0
      %v2283 = vmax.bf16 %v2251, 0
      %v2284 = vmax.bf16 %v2252, 0
      %v2285 = vmax.bf16 %v2253, 0
      %v2286 = vmax.bf16 %v2254, 0
      %v2287 = vmax.bf16 %v2255, 0
      %v2288 = vmax.bf16 %v2256, 0
      %v2289 = vld [vmem:[%s5] sm:$0xff]
      %v2290 = vld [vmem:[%s5 + $0x8] sm:$0xff]
      %v2291 = vld [vmem:[%s5 + $0x10] sm:$0xff]
      %v2292 = vld [vmem:[%s5 + $0x18] sm:$0xff]
      %v2293 = vld [vmem:[%s5 + $0x20] sm:$0xff]
      %v2294 = vld [vmem:[%s5 + $0x28] sm:$0xff]
      %v2295 = vld [vmem:[%s5 + $0x30] sm:$0xff]
      %v2296 = vld [vmem:[%s5 + $0x38] sm:$0xff]
      %v2297 = vld [vmem:[%s6] sm:$0xff]
      %v2298 = vld [vmem:[%s6 + $0x8] sm:$0xff]
      %v2299 = vld [vmem:[%s6 + $0x10] sm:$0xff]
      %v2300 = vld [vmem:[%s6 + $0x18] sm:$0xff]
      %v2301 = vld [vmem:[%s6 + $0x20] sm:$0xff]
      %v2302 = vld [vmem:[%s6 + $0x28] sm:$0xff]
      %v2303 = vld [vmem:[%s6 + $0x30] sm:$0xff]
      %v2304 = vld [vmem:[%s6 + $0x38] sm:$0xff]
      %2306 = vset.pattern.permute.xlu0 0
      %2307 = vperm.xlu0 %2306, %v2297
      %v2308 = vpop.permute.xlu0 %2307
      %2311 = vset.pattern.permute.xlu0 0
      %2312 = vperm.xlu0 %2311, %v2298
      %v2313 = vpop.permute.xlu0 %2312
      %2316 = vset.pattern.permute.xlu0 0
      %2317 = vperm.xlu0 %2316, %v2299
      %v2318 = vpop.permute.xlu0 %2317
      %2321 = vset.pattern.permute.xlu0 0
      %2322 = vperm.xlu0 %2321, %v2300
      %v2323 = vpop.permute.xlu0 %2322
      %2326 = vset.pattern.permute.xlu0 0
      %2327 = vperm.xlu0 %2326, %v2301
      %v2328 = vpop.permute.xlu0 %2327
      %2331 = vset.pattern.permute.xlu0 0
      %2332 = vperm.xlu0 %2331, %v2302
      %v2333 = vpop.permute.xlu0 %2332
      %2336 = vset.pattern.permute.xlu0 0
      %2337 = vperm.xlu0 %2336, %v2303
      %v2338 = vpop.permute.xlu0 %2337
      %2341 = vset.pattern.permute.xlu0 0
      %2342 = vperm.xlu0 %2341, %v2304
      %v2343 = vpop.permute.xlu0 %2342
      %v2353 = vunpack.c.l.b16 %v2289
      %v2354 = vunpack.c.h.b16 %v2289
      %v2355 = vunpack.c.l.b16 %v2290
      %v2356 = vunpack.c.h.b16 %v2290
      %v2357 = vunpack.c.l.b16 %v2291
      %v2358 = vunpack.c.h.b16 %v2291
      %v2359 = vunpack.c.l.b16 %v2292
      %v2360 = vunpack.c.h.b16 %v2292
      %v2361 = vunpack.c.l.b16 %v2293
      %v2362 = vunpack.c.h.b16 %v2293
      %v2363 = vunpack.c.l.b16 %v2294
      %v2364 = vunpack.c.h.b16 %v2294
      %v2365 = vunpack.c.l.b16 %v2295
      %v2366 = vunpack.c.h.b16 %v2295
      %v2367 = vunpack.c.l.b16 %v2296
      %v2368 = vunpack.c.h.b16 %v2296
      %v2369 = vpack.c.b16 %v2355, %v2353
      %v2370 = vpack.c.b16 %v2356, %v2354
      %v2371 = vpack.c.b16 %v2359, %v2357
      %v2372 = vpack.c.b16 %v2360, %v2358
      %v2373 = vpack.c.b16 %v2363, %v2361
      %v2374 = vpack.c.b16 %v2364, %v2362
      %v2375 = vpack.c.b16 %v2367, %v2365
      %v2376 = vpack.c.b16 %v2368, %v2366
      %2385 = vmatprep.subr.bf16.mxu0 %v2258
      %2386 = vmatpush1.bf16.msra.mxu0 %v2257
      %2387 = vmatprep.subr.bf16.mxu0 %v2260
      %2388 = vmatpush1.bf16.msra.mxu0 %v2259
      %2389 = vmatprep.subr.bf16.mxu0 %v2262
      %2390 = vmatpush1.bf16.msra.mxu0 %v2261
      %2391 = vmatprep.subr.bf16.mxu0 %v2264
      %2392 = vmatpush1.bf16.msra.mxu0 %v2263
      %2393 = vmatprep.subr.bf16.mxu0 %v2266
      %2394 = vmatpush1.bf16.msra.mxu0 %v2265
      %2395 = vmatprep.subr.bf16.mxu0 %v2268
      %2396 = vmatpush1.bf16.msra.mxu0 %v2267
      %2397 = vmatprep.subr.bf16.mxu0 %v2270
      %2398 = vmatpush1.bf16.msra.mxu0 %v2269
      %2399 = vmatprep.subr.bf16.mxu0 %v2272
      %2400 = vmatpush1.bf16.msra.mxu0 %v2271
      %2401 = vmatprep.subr.bf16.mxu0 %v2274
      %2402 = vmatpush1.bf16.msra.mxu0 %v2273
      %2403 = vmatprep.subr.bf16.mxu0 %v2276
      %2404 = vmatpush1.bf16.msra.mxu0 %v2275
      %2405 = vmatprep.subr.bf16.mxu0 %v2278
      %2406 = vmatpush1.bf16.msra.mxu0 %v2277
      %2407 = vmatprep.subr.bf16.mxu0 %v2280
      %2408 = vmatpush1.bf16.msra.mxu0 %v2279
      %2409 = vmatprep.subr.bf16.mxu0 %v2282
      %2410 = vmatpush1.bf16.msra.mxu0 %v2281
      %2411 = vmatprep.subr.bf16.mxu0 %v2284
      %2412 = vmatpush1.bf16.msra.mxu0 %v2283
      %2413 = vmatprep.subr.bf16.mxu0 %v2286
      %2414 = vmatpush1.bf16.msra.mxu0 %v2285
      %2415 = vmatprep.subr.bf16.mxu0 %v2288
      %2416 = vmatpush1.bf16.msra.mxu0 %v2287
      %2417 = vmatprep.mubr.bf16.mxu0 %v2370
      %2418 = vmatmul.mubr.bf16.gmra.mrb[0].mxu0 %v2369
      %v2419 = vpop.f32.mrb[0].mxu0
      %v2420 = vadd.f32 %v2308, %v2419
      %v2421 = vpop.f32.mrb[0].mxu0
      %v2422 = vadd.f32 %v2308, %v2421
      %v2423 = vpop.f32.mrb[0].mxu0
      %v2424 = vadd.f32 %v2313, %v2423
      %v2425 = vpop.f32.mrb[0].mxu0
      %v2426 = vadd.f32 %v2313, %v2425
      %2427 = vmatprep.mubr.bf16.mxu0 %v2372
      %2428 = vmatmul.mubr.bf16.gmra.mrb[0].mxu0 %v2371
      %v2429 = vpop.f32.mrb[0].mxu0
      %v2430 = vadd.f32 %v2318, %v2429
      %v2431 = vpop.f32.mrb[0].mxu0
      %v2432 = vadd.f32 %v2318, %v2431
      %v2433 = vpop.f32.mrb[0].mxu0
      %v2434 = vadd.f32 %v2323, %v2433
      %v2435 = vpop.f32.mrb[0].mxu0
      %v2436 = vadd.f32 %v2323, %v2435
      %2437 = vmatprep.mubr.bf16.mxu0 %v2374
      %2438 = vmatmul.mubr.bf16.gmra.mrb[0].mxu0 %v2373
      %v2439 = vpop.f32.mrb[0].mxu0
      %v2440 = vadd.f32 %v2328, %v2439
      %v2441 = vpop.f32.mrb[0].mxu0
      %v2442 = vadd.f32 %v2328, %v2441
      %v2443 = vpop.f32.mrb[0].mxu0
      %v2444 = vadd.f32 %v2333, %v2443
      %v2445 = vpop.f32.mrb[0].mxu0
      %v2446 = vadd.f32 %v2333, %v2445
      %2447 = vmatprep.mubr.bf16.mxu0 %v2376
      %2448 = vmatmul.mubr.bf16.gmra.mrb[0].mxu0 %v2375
      %v2449 = vpop.f32.mrb[0].mxu0
      %v2450 = vadd.f32 %v2338, %v2449
      %v2451 = vpop.f32.mrb[0].mxu0
      %v2452 = vadd.f32 %v2338, %v2451
      %v2453 = vpop.f32.mrb[0].mxu0
      %v2454 = vadd.f32 %v2343, %v2453
      %v2455 = vpop.f32.mrb[0].mxu0
      %v2456 = vadd.f32 %v2343, %v2455
      %2457 = vdwg.mxu0
      %2458 = vst [vmem:[%s316] sm:$0xff] %v2420
      %2459 = vst [vmem:[%s316 + $0x8] sm:$0xff] %v2422
      %2460 = vst [vmem:[%s316 + $0x10] sm:$0xff] %v2424
      %2461 = vst [vmem:[%s316 + $0x18] sm:$0xff] %v2426
      %2462 = vst [vmem:[%s316 + $0x20] sm:$0xff] %v2430
      %2463 = vst [vmem:[%s316 + $0x28] sm:$0xff] %v2432
      %2464 = vst [vmem:[%s316 + $0x30] sm:$0xff] %v2434
      %2465 = vst [vmem:[%s316 + $0x38] sm:$0xff] %v2436
      %2466 = vst [vmem:[%s316 + $0x40] sm:$0xff] %v2440
      %2467 = vst [vmem:[%s316 + $0x48] sm:$0xff] %v2442
      %2468 = vst [vmem:[%s316 + $0x50] sm:$0xff] %v2444
      %2469 = vst [vmem:[%s316 + $0x58] sm:$0xff] %v2446
      %2470 = vst [vmem:[%s316 + $0x60] sm:$0xff] %v2450
      %2471 = vst [vmem:[%s316 + $0x68] sm:$0xff] %v2452
      %2472 = vst [vmem:[%s316 + $0x70] sm:$0xff] %v2454
      %2473 = vst [vmem:[%s316 + $0x78] sm:$0xff] %v2456
      %s2474 = smul.u32 2, %s23
      %p2475 = scmp.lt.s32.totalorder %s22, 1
      %s2476 = scalar_select %p2475, %s22, 1
      %p2477 = scmp.lt.s32.totalorder %s2474, 1
      %s2478 = scalar_select %p2477, %s2474, 1
      %s2479 = smul.addr %s2476, 16
      %s2480 = sadd.s32 %s2478, %s2479
      %s2481 = smul.addr %s2480, 8
      %s2482 = scalar_lea.vmem %s7, %s2481
      // Predicated region
      $region49: #{decoder_forward.1} parent=47 // pred_check
        %p2483 = pneg %p204
      $region50: #{decoder_forward.1} parent=47 // pred_check_branch
        %2485 = sbr.rel (%p2483) target = $region52
      $region51: #{decoder_forward.1} parent=47 // pred_region
        %s2486 = smul.u32 2, %s23
      $region52: #{decoder_forward.1} parent=47 // pred_fallthru
        _
    $region48: #{decoder_forward.1} parent=5 // pred_fallthru
      _
    %p2487 = scmp.le.s32.totalorder 2, %s13
    // Predicated region
    $region53: #{decoder_forward.1} parent=5 // pred_check
      %p2488 = pneg %p2487
    $region54: #{decoder_forward.1} parent=5 // pred_check_branch
      %2490 = sbr.rel (%p2488) target = $region56
    $region55: #{decoder_forward.1} parent=5 // pred_region
      %s2491 = ssub.s32 %s13, 2
      // Predicated region
      $region57: #{decoder_forward.1} parent=55 // pred_check
        %p2492 = pneg %p210
      $region58: #{decoder_forward.1} parent=55 // pred_check_branch
        %2494 = sbr.rel (%p2492) target = $region60
      $region59: #{decoder_forward.1} parent=55 // pred_region
        %s2495 = smul.u32 2, %s25
        %p2496 = scmp.lt.s32.totalorder %s24, 1
        %s2497 = scalar_select %p2496, %s24, 1
        %p2498 = scmp.lt.s32.totalorder %s2495, 1
        %s2499 = scalar_select %p2498, %s2495, 1
        %s2500 = smul.addr %s2497, 16
        %s2501 = sadd.s32 %s2499, %s2500
        %s2502 = smul.addr %s2501, 8
        %s2503 = scalar_lea.vmem %s7, %s2502
      $region60: #{decoder_forward.1} parent=55 // pred_fallthru
        _
    $region56: #{decoder_forward.1} parent=5 // pred_fallthru
      _
  $region6: #{decoder_forward.1} parent=0 // loop_footer
    %s17 = sadd.s32 1, %s13
  $region7: #{decoder_forward.1} parent=0 // loop_footer_branch
    %12 = sbr.rel target = $region3
  $region8: #{decoder_forward.1} parent=0 // loop_exit
    _

</llo_original>
